<compile_context>
chip_gen: v7x
topology: tpu7x:2x2x1
jax: 0.10.0
libtpu: 0.0.40
codegen_flags: <defaults>
</compile_context>

<pallas_src>
import functools
import math

import jax
import jax.numpy as jnp
from jax.experimental import pallas as pl
from jax.experimental.pallas import tpu as pltpu


def _lga_kernel(x_ref, wqkv_ref, bqkv_ref, wp_ref, bp_ref, out_ref, *,
                num_heads, head_dim, g_blk, s, approx_recip):
    """One grid step: g_blk windows, fused qkv -> attention -> fused proj."""
    C = num_heads * head_dim
    M = g_blk * s

    x = x_ref[...]                                              # (M, C) bf16

    # Fused QKV projection (attention scale pre-folded into the q columns),
    # single f32 bias add, then one cast to bf16 for all downstream matmuls.
    qkv = jnp.dot(x, wqkv_ref[...], preferred_element_type=jnp.float32)
    qkv = (qkv + bqkv_ref[...]).astype(jnp.bfloat16)            # (M, 3C)

    heads = []
    for h in range(num_heads):                                  # static unroll
        lo = h * head_dim
        q = qkv[:, lo:lo + head_dim].reshape(g_blk, s, head_dim)
        k = qkv[:, C + lo:C + lo + head_dim].reshape(g_blk, s, head_dim)
        v = qkv[:, 2 * C + lo:2 * C + lo + head_dim].reshape(g_blk, s, head_dim)

        # Attention for this head, batched over the g_blk windows (f32 softmax).
        sc = jnp.einsum('gqd,gkd->gqk', q, k,
                        preferred_element_type=jnp.float32)     # (g, s, s)
        sc = sc - jnp.max(sc, axis=-1, keepdims=True)
        p = jnp.exp(sc)
        l = jnp.sum(p, axis=-1, keepdims=True)
        o = jnp.einsum('gqk,gkd->gqd', p.astype(jnp.bfloat16), v,
                       preferred_element_type=jnp.float32)      # (g, s, hd)
        if approx_recip:
            o = o * pl.reciprocal(l, approx=True)
        else:
            o = o / l
        heads.append(o.reshape(M, head_dim).astype(jnp.bfloat16))

    # Head concat along lanes, then one output projection with K = C.
    o_all = jnp.concatenate(heads, axis=-1)                     # (M, C) bf16
    out = jnp.dot(o_all, wp_ref[...], preferred_element_type=jnp.float32)
    out_ref[...] = (out + bp_ref[...]).astype(out_ref.dtype)


def _pick_window_block(G, S, C, window_block):
    """Windows/grid-step: sublane-aligned, >=2 blocks if possible, VMEM-bounded."""
    step = 8 // math.gcd(S, 8)          # granularity so g_blk*S % 8 == 0
    g = min(window_block, G)
    if G >= 2 * step:                   # keep >= 2 grid blocks (v7x has 2 TCs)
        g = min(g, -(-G // 2))
    g = max(step, (g // step) * step)

    def vmem_est(gb):                   # rough per-step working set (bytes)
        m = gb * S
        return (8 * m * C               # in + out blocks, double-buffered bf16
                + 18 * m * C            # qkv f32 + bf16 copies
                + 6 * m * C             # head concat bf16 + proj f32 result
                + 8 * gb * S * S        # scores + probs f32
                + 16 * C * C)           # weights, double-buffered bf16

    while g > step and vmem_est(g) > 28 * 1024 * 1024:
        g -= step
    return g


def locally_grouped_attn(x, size, params, *, num_heads, ws, window_block=64,
                         approx_recip=True):
    """x: [B, N, C], size = (H, W) with H*W == N.  LocallyGroupedAttn.forward."""
    B, N, C = x.shape
    H, W = size
    assert H * W == N
    assert C % num_heads == 0
    head_dim = C // num_heads
    scale = head_dim ** -0.5

    # ---- glue: pad + window partition, fused with the bf16 cast ----
    xg = x.reshape(B, H, W, C)
    pad_r = (ws - W % ws) % ws
    pad_b = (ws - H % ws) % ws
    xg = jnp.pad(xg, ((0, 0), (0, pad_b), (0, pad_r), (0, 0)))
    Hp, Wp = H + pad_b, W + pad_r
    _h, _w = Hp // ws, Wp // ws
    S = ws * ws
    G = B * _h * _w
    xg = xg.reshape(B, _h, ws, _w, ws, C)
    xg = jnp.transpose(xg, (0, 1, 3, 2, 4, 5))                  # (B,_h,_w,ws,ws,C)
    xwin = xg.reshape(G * S, C)

    g_blk = _pick_window_block(G, S, C, window_block)
    num_blocks = pl.cdiv(G, g_blk)
    G_pad = num_blocks * g_blk
    if G_pad > G:
        xwin = jnp.pad(xwin, ((0, (G_pad - G) * S), (0, 0)))
    xwin = xwin.astype(jnp.bfloat16)
    M_blk = g_blk * S

    # ---- parameters: fuse QKV, fold attention scale into q, cast to bf16 ----
    w_qkv, b_qkv = params["w_qkv"], params["b_qkv"]             # (3C, C), (3C,)
    wqkv = jnp.transpose(w_qkv)                                 # (C, 3C) = [q|k|v]
    col_scale = jnp.concatenate(
        [jnp.full((C,), scale, wqkv.dtype), jnp.ones((2 * C,), wqkv.dtype)])
    wqkv = (wqkv * col_scale[None, :]).astype(jnp.bfloat16)
    bqkv = (b_qkv * col_scale).reshape(1, 3 * C).astype(jnp.float32)
    wp = jnp.transpose(params["w_proj"]).astype(jnp.bfloat16)   # (C, C)
    bp = params["b_proj"].reshape(1, C).astype(jnp.float32)

    kernel = functools.partial(_lga_kernel, num_heads=num_heads,
                               head_dim=head_dim, g_blk=g_blk, s=S,
                               approx_recip=approx_recip)

    # VMEM limit: ~3/4 of physical, capped at 96 MiB (128 MiB v5e/v6e, 64 MiB v7x).
    try:
        vmem_cap = int(pltpu.get_tpu_info().vmem_capacity_bytes)
    except Exception:
        vmem_cap = 64 * 1024 * 1024
    vmem_limit = max(32 * 1024 * 1024,
                     min(96 * 1024 * 1024, (vmem_cap * 3) // 4))

    # Cost estimate (bf16-streamed I/O): QKV + scores + p@v + proj FLOPs.
    flops = int(G_pad * (8 * S * C * C + 4 * S * S * C))
    transcendentals = int(G_pad * num_heads * S * S)
    bytes_accessed = int(2 * G_pad * S * C * 2 + 4 * C * C * 2 + 4 * C * 4)

    out_win = pl.pallas_call(
        kernel,
        out_shape=jax.ShapeDtypeStruct((G_pad * S, C), jnp.bfloat16),
        grid_spec=pltpu.PrefetchScalarGridSpec(
            num_scalar_prefetch=0,
            grid=(num_blocks,),
            in_specs=[
                pl.BlockSpec((M_blk, C), lambda g: (g, 0)),
                pl.BlockSpec((C, 3 * C), lambda g: (0, 0)),
                pl.BlockSpec((1, 3 * C), lambda g: (0, 0)),
                pl.BlockSpec((C, C), lambda g: (0, 0)),
                pl.BlockSpec((1, C), lambda g: (0, 0)),
            ],
            out_specs=pl.BlockSpec((M_blk, C), lambda g: (g, 0)),
        ),
        compiler_params=pltpu.CompilerParams(
            dimension_semantics=("parallel",),
            vmem_limit_bytes=vmem_limit),
        cost_estimate=pl.CostEstimate(
            flops=flops, transcendentals=transcendentals,
            bytes_accessed=bytes_accessed),
    )(xwin, wqkv, bqkv, wp, bp)

    # ---- glue: drop window padding, un-partition, drop spatial padding ----
    y = out_win[:G * S].reshape(B, _h, _w, ws, ws, C)
    y = jnp.transpose(y, (0, 1, 3, 2, 4, 5)).reshape(B, Hp, Wp, C)
    y = y[:, :H, :W, :].astype(x.dtype)
    return y.reshape(B, N, C)


def _reference(x, size, params, *, num_heads, ws):
    """Pure-JAX reference mirroring the PyTorch forward (no dropout)."""
    B, N, C = x.shape
    H, W = size
    hd = C // num_heads
    scale = hd ** -0.5
    xg = x.reshape(B, H, W, C)
    pad_r = (ws - W % ws) % ws
    pad_b = (ws - H % ws) % ws
    xg = jnp.pad(xg, ((0, 0), (0, pad_b), (0, pad_r), (0, 0)))
    Hp, Wp = H + pad_b, W + pad_r
    _h, _w = Hp // ws, Wp // ws
    xg = xg.reshape(B, _h, ws, _w, ws, C).transpose(0, 1, 3, 2, 4, 5)
    qkv = xg @ params["w_qkv"].T + params["b_qkv"]
    qkv = qkv.reshape(B, _h * _w, ws * ws, 3, num_heads, hd)
    qkv = jnp.transpose(qkv, (3, 0, 1, 4, 2, 5))
    q, k, v = qkv[0], qkv[1], qkv[2]
    attn = (q * scale) @ jnp.swapaxes(k, -2, -1)
    attn = jax.nn.softmax(attn, axis=-1)
    o = attn @ v
    o = jnp.swapaxes(o, 2, 3).reshape(B, _h, _w, ws, ws, C)
    o = jnp.transpose(o, (0, 1, 3, 2, 4, 5)).reshape(B, Hp, Wp, C)
    o = o[:, :H, :W, :].reshape(B, N, C)
    return o @ params["w_proj"].T + params["b_proj"]


if __name__ == "__main__":
    # Small config consistent with the module: dim=32, num_heads=4, ws=4,
    # spatial 7x7 (exercises the padding path), batch 2.
    B, H, W = 2, 7, 7
    C, num_heads, ws = 32, 4, 4
    N = H * W

    key = jax.random.PRNGKey(0)
    k_x, k_wqkv, k_bqkv, k_wp, k_bp = jax.random.split(key, 5)
    x = jax.random.normal(k_x, (B, N, C), dtype=jnp.float32)
    params = {
        "w_qkv": jax.random.normal(k_wqkv, (3 * C, C), dtype=jnp.float32) * 0.05,
        "b_qkv": jax.random.normal(k_bqkv, (3 * C,), dtype=jnp.float32) * 0.05,
        "w_proj": jax.random.normal(k_wp, (C, C), dtype=jnp.float32) * 0.05,
        "b_proj": jax.random.normal(k_bp, (C,), dtype=jnp.float32) * 0.05,
    }

    out = locally_grouped_attn(x, (H, W), params, num_heads=num_heads, ws=ws)
    out = jax.block_until_ready(out)

    ref = _reference(x, (H, W), params, num_heads=num_heads, ws=ws)
    assert out.shape == (B, N, C)
    # bf16 streaming + bf16 MXU matmuls + approx reciprocal -> relaxed tolerance.
    assert jnp.allclose(out, ref, atol=2e-2, rtol=2e-2), "mismatch vs reference"

    # TODO(synk): attn_drop / proj_drop are identity at p=0.0 (eval); dropout not implemented.
    print("KERNEL_OK")
</pallas_src>

<mosaic_0001>
module attributes {stable_mosaic.version = 11 : i64} {
  func.func @_lga_kernel(%arg0: i32, %arg1: memref<64x32xbf16, #tpu.memory_space<vmem>>, %arg2: memref<32x96xbf16, #tpu.memory_space<vmem>>, %arg3: memref<1x96xf32, #tpu.memory_space<vmem>>, %arg4: memref<32x32xbf16, #tpu.memory_space<vmem>>, %arg5: memref<1x32xf32, #tpu.memory_space<vmem>>, %arg6: memref<64x32xbf16, #tpu.memory_space<vmem>>) attributes {dimension_semantics = [#tpu.dimension_semantics<parallel>], iteration_bounds = array<i64: 2>, scalar_prefetch = 0 : i64, scratch_operands = 0 : i64, tpu.core_type = #tpu.core_type<tc>, window_params = [{transform_indices = @transform_0, window_bounds = array<i64: 64, 32>}, {pipeline_mode = #tpu.pipeline_mode<synchronous>, transform_indices = @transform_1, window_bounds = array<i64: 32, 96>}, {pipeline_mode = #tpu.pipeline_mode<synchronous>, transform_indices = @transform_2, window_bounds = array<i64: 1, 96>}, {pipeline_mode = #tpu.pipeline_mode<synchronous>, transform_indices = @transform_3, window_bounds = array<i64: 32, 32>}, {pipeline_mode = #tpu.pipeline_mode<synchronous>, transform_indices = @transform_4, window_bounds = array<i64: 1, 32>}, {transform_indices = @transform_5, window_bounds = array<i64: 64, 32>}]} {
    %c0 = arith.constant 0 : index
    %c0_0 = arith.constant 0 : index
    %0 = vector.load %arg1[%c0, %c0_0] : memref<64x32xbf16, #tpu.memory_space<vmem>>, vector<64x32xbf16>
    %c0_1 = arith.constant 0 : index
    %c0_2 = arith.constant 0 : index
    %1 = vector.load %arg2[%c0_1, %c0_2] : memref<32x96xbf16, #tpu.memory_space<vmem>>, vector<32x96xbf16>
    %cst = arith.constant dense<0.000000e+00> : vector<64x96xf32>
    %2 = tpu.matmul %0, %1, %cst {dimension_numbers = #tpu.dot_dimension_numbers<[1], [0], [0], [1], [0, 0, 1, 1], [], []>} : vector<64x32xbf16>, vector<32x96xbf16>, vector<64x96xf32> -> vector<64x96xf32>
    %c0_3 = arith.constant 0 : index
    %c0_4 = arith.constant 0 : index
    %3 = vector.load %arg3[%c0_3, %c0_4] : memref<1x96xf32, #tpu.memory_space<vmem>>, vector<1x96xf32>
    %4 = vector.broadcast %3 : vector<1x96xf32> to vector<64x96xf32>
    %5 = arith.addf %2, %4 : vector<64x96xf32>
    %6 = arith.truncf %5 : vector<64x96xf32> to vector<64x96xbf16>
    %7 = vector.extract_strided_slice %6 {offsets = [0, 0], sizes = [64, 8], strides = [1, 1]} : vector<64x96xbf16> to vector<64x8xbf16>
    %8 = vector.shape_cast %7 : vector<64x8xbf16> to vector<4x16x8xbf16>
    %9 = vector.extract_strided_slice %6 {offsets = [0, 32], sizes = [64, 8], strides = [1, 1]} : vector<64x96xbf16> to vector<64x8xbf16>
    %10 = vector.shape_cast %9 : vector<64x8xbf16> to vector<4x16x8xbf16>
    %11 = vector.extract_strided_slice %6 {offsets = [0, 64], sizes = [64, 8], strides = [1, 1]} : vector<64x96xbf16> to vector<64x8xbf16>
    %12 = vector.shape_cast %11 : vector<64x8xbf16> to vector<4x16x8xbf16>
    "tpu.trace_start"() <{level = 10 : i32, message = "gqd,gkd->gqk"}> : () -> ()
    %cst_5 = arith.constant dense<0.000000e+00> : vector<4x16x16xf32>
    %13 = tpu.matmul %8, %10, %cst_5 {dimension_numbers = #tpu.dot_dimension_numbers<[2], [2], [1], [1], [0, 0, 0, 1, 1, 1], [0], [0]>} : vector<4x16x8xbf16>, vector<4x16x8xbf16>, vector<4x16x16xf32> -> vector<4x16x16xf32>
    "tpu.trace_stop"() : () -> ()
    %cst_6 = arith.constant dense<0xFF800000> : vector<4x16xf32>
    %14 = vector.multi_reduction <maximumf>, %13, %cst_6 [2] : vector<4x16x16xf32> to vector<4x16xf32>
    %15 = vector.shape_cast %14 : vector<4x16xf32> to vector<4x16x1xf32>
    %16 = vector.broadcast %15 : vector<4x16x1xf32> to vector<4x16x16xf32>
    %17 = arith.subf %13, %16 : vector<4x16x16xf32>
    %18 = math.exp %17 : vector<4x16x16xf32>
    %cst_7 = arith.constant dense<0.000000e+00> : vector<4x16xf32>
    %19 = vector.multi_reduction <add>, %18, %cst_7 [2] : vector<4x16x16xf32> to vector<4x16xf32>
    %20 = vector.shape_cast %19 : vector<4x16xf32> to vector<4x16x1xf32>
    %21 = arith.truncf %18 : vector<4x16x16xf32> to vector<4x16x16xbf16>
    "tpu.trace_start"() <{level = 10 : i32, message = "gqk,gkd->gqd"}> : () -> ()
    %cst_8 = arith.constant dense<0.000000e+00> : vector<4x16x8xf32>
    %22 = tpu.matmul %21, %12, %cst_8 {dimension_numbers = #tpu.dot_dimension_numbers<[2], [1], [1], [2], [0, 0, 0, 1, 1, 2], [0], [0]>} : vector<4x16x16xbf16>, vector<4x16x8xbf16>, vector<4x16x8xf32> -> vector<4x16x8xf32>
    "tpu.trace_stop"() : () -> ()
    %23 = tpu.reciprocal %20 {approx = true} : vector<4x16x1xf32> -> vector<4x16x1xf32>
    %24 = vector.broadcast %23 : vector<4x16x1xf32> to vector<4x16x8xf32>
    %25 = arith.mulf %22, %24 : vector<4x16x8xf32>
    %26 = vector.shape_cast %25 : vector<4x16x8xf32> to vector<64x8xf32>
    %27 = arith.truncf %26 : vector<64x8xf32> to vector<64x8xbf16>
    %28 = vector.extract_strided_slice %6 {offsets = [0, 8], sizes = [64, 8], strides = [1, 1]} : vector<64x96xbf16> to vector<64x8xbf16>
    %29 = vector.shape_cast %28 : vector<64x8xbf16> to vector<4x16x8xbf16>
    %30 = vector.extract_strided_slice %6 {offsets = [0, 40], sizes = [64, 8], strides = [1, 1]} : vector<64x96xbf16> to vector<64x8xbf16>
    %31 = vector.shape_cast %30 : vector<64x8xbf16> to vector<4x16x8xbf16>
    %32 = vector.extract_strided_slice %6 {offsets = [0, 72], sizes = [64, 8], strides = [1, 1]} : vector<64x96xbf16> to vector<64x8xbf16>
    %33 = vector.shape_cast %32 : vector<64x8xbf16> to vector<4x16x8xbf16>
    "tpu.trace_start"() <{level = 10 : i32, message = "gqd,gkd->gqk"}> : () -> ()
    %cst_9 = arith.constant dense<0.000000e+00> : vector<4x16x16xf32>
    %34 = tpu.matmul %29, %31, %cst_9 {dimension_numbers = #tpu.dot_dimension_numbers<[2], [2], [1], [1], [0, 0, 0, 1, 1, 1], [0], [0]>} : vector<4x16x8xbf16>, vector<4x16x8xbf16>, vector<4x16x16xf32> -> vector<4x16x16xf32>
    "tpu.trace_stop"() : () -> ()
    %cst_10 = arith.constant dense<0xFF800000> : vector<4x16xf32>
    %35 = vector.multi_reduction <maximumf>, %34, %cst_10 [2] : vector<4x16x16xf32> to vector<4x16xf32>
    %36 = vector.shape_cast %35 : vector<4x16xf32> to vector<4x16x1xf32>
    %37 = vector.broadcast %36 : vector<4x16x1xf32> to vector<4x16x16xf32>
    %38 = arith.subf %34, %37 : vector<4x16x16xf32>
    %39 = math.exp %38 : vector<4x16x16xf32>
    %cst_11 = arith.constant dense<0.000000e+00> : vector<4x16xf32>
    %40 = vector.multi_reduction <add>, %39, %cst_11 [2] : vector<4x16x16xf32> to vector<4x16xf32>
    %41 = vector.shape_cast %40 : vector<4x16xf32> to vector<4x16x1xf32>
    %42 = arith.truncf %39 : vector<4x16x16xf32> to vector<4x16x16xbf16>
    "tpu.trace_start"() <{level = 10 : i32, message = "gqk,gkd->gqd"}> : () -> ()
    %cst_12 = arith.constant dense<0.000000e+00> : vector<4x16x8xf32>
    %43 = tpu.matmul %42, %33, %cst_12 {dimension_numbers = #tpu.dot_dimension_numbers<[2], [1], [1], [2], [0, 0, 0, 1, 1, 2], [0], [0]>} : vector<4x16x16xbf16>, vector<4x16x8xbf16>, vector<4x16x8xf32> -> vector<4x16x8xf32>
    "tpu.trace_stop"() : () -> ()
    %44 = tpu.reciprocal %41 {approx = true} : vector<4x16x1xf32> -> vector<4x16x1xf32>
    %45 = vector.broadcast %44 : vector<4x16x1xf32> to vector<4x16x8xf32>
    %46 = arith.mulf %43, %45 : vector<4x16x8xf32>
    %47 = vector.shape_cast %46 : vector<4x16x8xf32> to vector<64x8xf32>
    %48 = arith.truncf %47 : vector<64x8xf32> to vector<64x8xbf16>
    %49 = vector.extract_strided_slice %6 {offsets = [0, 16], sizes = [64, 8], strides = [1, 1]} : vector<64x96xbf16> to vector<64x8xbf16>
    %50 = vector.shape_cast %49 : vector<64x8xbf16> to vector<4x16x8xbf16>
    %51 = vector.extract_strided_slice %6 {offsets = [0, 48], sizes = [64, 8], strides = [1, 1]} : vector<64x96xbf16> to vector<64x8xbf16>
    %52 = vector.shape_cast %51 : vector<64x8xbf16> to vector<4x16x8xbf16>
    %53 = vector.extract_strided_slice %6 {offsets = [0, 80], sizes = [64, 8], strides = [1, 1]} : vector<64x96xbf16> to vector<64x8xbf16>
    %54 = vector.shape_cast %53 : vector<64x8xbf16> to vector<4x16x8xbf16>
    "tpu.trace_start"() <{level = 10 : i32, message = "gqd,gkd->gqk"}> : () -> ()
    %cst_13 = arith.constant dense<0.000000e+00> : vector<4x16x16xf32>
    %55 = tpu.matmul %50, %52, %cst_13 {dimension_numbers = #tpu.dot_dimension_numbers<[2], [2], [1], [1], [0, 0, 0, 1, 1, 1], [0], [0]>} : vector<4x16x8xbf16>, vector<4x16x8xbf16>, vector<4x16x16xf32> -> vector<4x16x16xf32>
    "tpu.trace_stop"() : () -> ()
    %cst_14 = arith.constant dense<0xFF800000> : vector<4x16xf32>
    %56 = vector.multi_reduction <maximumf>, %55, %cst_14 [2] : vector<4x16x16xf32> to vector<4x16xf32>
    %57 = vector.shape_cast %56 : vector<4x16xf32> to vector<4x16x1xf32>
    %58 = vector.broadcast %57 : vector<4x16x1xf32> to vector<4x16x16xf32>
    %59 = arith.subf %55, %58 : vector<4x16x16xf32>
    %60 = math.exp %59 : vector<4x16x16xf32>
    %cst_15 = arith.constant dense<0.000000e+00> : vector<4x16xf32>
    %61 = vector.multi_reduction <add>, %60, %cst_15 [2] : vector<4x16x16xf32> to vector<4x16xf32>
    %62 = vector.shape_cast %61 : vector<4x16xf32> to vector<4x16x1xf32>
    %63 = arith.truncf %60 : vector<4x16x16xf32> to vector<4x16x16xbf16>
    "tpu.trace_start"() <{level = 10 : i32, message = "gqk,gkd->gqd"}> : () -> ()
    %cst_16 = arith.constant dense<0.000000e+00> : vector<4x16x8xf32>
    %64 = tpu.matmul %63, %54, %cst_16 {dimension_numbers = #tpu.dot_dimension_numbers<[2], [1], [1], [2], [0, 0, 0, 1, 1, 2], [0], [0]>} : vector<4x16x16xbf16>, vector<4x16x8xbf16>, vector<4x16x8xf32> -> vector<4x16x8xf32>
    "tpu.trace_stop"() : () -> ()
    %65 = tpu.reciprocal %62 {approx = true} : vector<4x16x1xf32> -> vector<4x16x1xf32>
    %66 = vector.broadcast %65 : vector<4x16x1xf32> to vector<4x16x8xf32>
    %67 = arith.mulf %64, %66 : vector<4x16x8xf32>
    %68 = vector.shape_cast %67 : vector<4x16x8xf32> to vector<64x8xf32>
    %69 = arith.truncf %68 : vector<64x8xf32> to vector<64x8xbf16>
    %70 = vector.extract_strided_slice %6 {offsets = [0, 24], sizes = [64, 8], strides = [1, 1]} : vector<64x96xbf16> to vector<64x8xbf16>
    %71 = vector.shape_cast %70 : vector<64x8xbf16> to vector<4x16x8xbf16>
    %72 = vector.extract_strided_slice %6 {offsets = [0, 56], sizes = [64, 8], strides = [1, 1]} : vector<64x96xbf16> to vector<64x8xbf16>
    %73 = vector.shape_cast %72 : vector<64x8xbf16> to vector<4x16x8xbf16>
    %74 = vector.extract_strided_slice %6 {offsets = [0, 88], sizes = [64, 8], strides = [1, 1]} : vector<64x96xbf16> to vector<64x8xbf16>
    %75 = vector.shape_cast %74 : vector<64x8xbf16> to vector<4x16x8xbf16>
    "tpu.trace_start"() <{level = 10 : i32, message = "gqd,gkd->gqk"}> : () -> ()
    %cst_17 = arith.constant dense<0.000000e+00> : vector<4x16x16xf32>
    %76 = tpu.matmul %71, %73, %cst_17 {dimension_numbers = #tpu.dot_dimension_numbers<[2], [2], [1], [1], [0, 0, 0, 1, 1, 1], [0], [0]>} : vector<4x16x8xbf16>, vector<4x16x8xbf16>, vector<4x16x16xf32> -> vector<4x16x16xf32>
    "tpu.trace_stop"() : () -> ()
    %cst_18 = arith.constant dense<0xFF800000> : vector<4x16xf32>
    %77 = vector.multi_reduction <maximumf>, %76, %cst_18 [2] : vector<4x16x16xf32> to vector<4x16xf32>
    %78 = vector.shape_cast %77 : vector<4x16xf32> to vector<4x16x1xf32>
    %79 = vector.broadcast %78 : vector<4x16x1xf32> to vector<4x16x16xf32>
    %80 = arith.subf %76, %79 : vector<4x16x16xf32>
    %81 = math.exp %80 : vector<4x16x16xf32>
    %cst_19 = arith.constant dense<0.000000e+00> : vector<4x16xf32>
    %82 = vector.multi_reduction <add>, %81, %cst_19 [2] : vector<4x16x16xf32> to vector<4x16xf32>
    %83 = vector.shape_cast %82 : vector<4x16xf32> to vector<4x16x1xf32>
    %84 = arith.truncf %81 : vector<4x16x16xf32> to vector<4x16x16xbf16>
    "tpu.trace_start"() <{level = 10 : i32, message = "gqk,gkd->gqd"}> : () -> ()
    %cst_20 = arith.constant dense<0.000000e+00> : vector<4x16x8xf32>
    %85 = tpu.matmul %84, %75, %cst_20 {dimension_numbers = #tpu.dot_dimension_numbers<[2], [1], [1], [2], [0, 0, 0, 1, 1, 2], [0], [0]>} : vector<4x16x16xbf16>, vector<4x16x8xbf16>, vector<4x16x8xf32> -> vector<4x16x8xf32>
    "tpu.trace_stop"() : () -> ()
    %86 = tpu.reciprocal %83 {approx = true} : vector<4x16x1xf32> -> vector<4x16x1xf32>
    %87 = vector.broadcast %86 : vector<4x16x1xf32> to vector<4x16x8xf32>
    %88 = arith.mulf %85, %87 : vector<4x16x8xf32>
    %89 = vector.shape_cast %88 : vector<4x16x8xf32> to vector<64x8xf32>
    %90 = arith.truncf %89 : vector<64x8xf32> to vector<64x8xbf16>
    %91 = tpu.concatenate %27, %48, %69, %90 in 1 : vector<64x8xbf16>, vector<64x8xbf16>, vector<64x8xbf16>, vector<64x8xbf16> -> vector<64x32xbf16>
    %c0_21 = arith.constant 0 : index
    %c0_22 = arith.constant 0 : index
    %92 = vector.load %arg4[%c0_21, %c0_22] : memref<32x32xbf16, #tpu.memory_space<vmem>>, vector<32x32xbf16>
    %cst_23 = arith.constant dense<0.000000e+00> : vector<64x32xf32>
    %93 = tpu.matmul %91, %92, %cst_23 {dimension_numbers = #tpu.dot_dimension_numbers<[1], [0], [0], [1], [0, 0, 1, 1], [], []>} : vector<64x32xbf16>, vector<32x32xbf16>, vector<64x32xf32> -> vector<64x32xf32>
    %c0_24 = arith.constant 0 : index
    %c0_25 = arith.constant 0 : index
    %94 = vector.load %arg5[%c0_24, %c0_25] : memref<1x32xf32, #tpu.memory_space<vmem>>, vector<1x32xf32>
    %95 = vector.broadcast %94 : vector<1x32xf32> to vector<64x32xf32>
    %96 = arith.addf %93, %95 : vector<64x32xf32>
    %97 = arith.truncf %96 : vector<64x32xf32> to vector<64x32xbf16>
    %c0_26 = arith.constant 0 : index
    %c0_27 = arith.constant 0 : index
    %98 = vector.load %arg6[%c0_26, %c0_27] : memref<64x32xbf16, #tpu.memory_space<vmem>>, vector<64x32xbf16>
    tpu.vector_store %arg6[%c0_26, %c0_27], %97 {strides = array<i32>} : memref<64x32xbf16, #tpu.memory_space<vmem>>, vector<64x32xbf16>,
    return
  }
  func.func @transform_0(%arg0: i32) -> (i32, i32) {
    %c0_i32 = arith.constant 0 : i32
    %c0_i32_0 = arith.constant 0 : i32
    return %arg0, %c0_i32 : i32, i32
  }
  func.func @transform_1(%arg0: i32) -> (i32, i32) {
    %c0_i32 = arith.constant 0 : i32
    %c0_i32_0 = arith.constant 0 : i32
    %c0_i32_1 = arith.constant 0 : i32
    return %c0_i32, %c0_i32_0 : i32, i32
  }
  func.func @transform_2(%arg0: i32) -> (i32, i32) {
    %c0_i32 = arith.constant 0 : i32
    %c0_i32_0 = arith.constant 0 : i32
    %c0_i32_1 = arith.constant 0 : i32
    return %c0_i32, %c0_i32_0 : i32, i32
  }
  func.func @transform_3(%arg0: i32) -> (i32, i32) {
    %c0_i32 = arith.constant 0 : i32
    %c0_i32_0 = arith.constant 0 : i32
    %c0_i32_1 = arith.constant 0 : i32
    return %c0_i32, %c0_i32_0 : i32, i32
  }
  func.func @transform_4(%arg0: i32) -> (i32, i32) {
    %c0_i32 = arith.constant 0 : i32
    %c0_i32_0 = arith.constant 0 : i32
    %c0_i32_1 = arith.constant 0 : i32
    return %c0_i32, %c0_i32_0 : i32, i32
  }
  func.func @transform_5(%arg0: i32) -> (i32, i32) {
    %c0_i32 = arith.constant 0 : i32
    %c0_i32_0 = arith.constant 0 : i32
    return %arg0, %c0_i32 : i32, i32
  }
}

</mosaic_0001>

<llo_original>
// kernel: tpu_custom_call.1
$region0: #{tpu_custom_call.1}
  #allocation0 [shape = 'u32[]', space=smem, size = 0x4, offset = 0x4, fixed_abs, tag = 'smem constant byte address 0x4 - core index']
  #allocation1 [shape = 'u32[144,128]{1,0:T(1,128)}', space=vmem, size = 0x12000, scoped, tag = 'internal scratch']
  %s0 = inlined_call_operand.vmem [shape: bf16[128,32], index: 0, kind: input, shape index: {}]
  %s1 = inlined_call_operand.vmem [shape: bf16[32,96], index: 1, kind: input, shape index: {}]
  %s2 = inlined_call_operand.vmem [shape: f32[1,96], index: 2, kind: input, shape index: {}]
  %s3 = inlined_call_operand.vmem [shape: bf16[32,32], index: 3, kind: input, shape index: {}]
  %s4 = inlined_call_operand.vmem [shape: f32[1,32], index: 4, kind: input, shape index: {}]
  %s5 = inlined_call_operand.vmem [shape: bf16[128,32], index: 5, kind: output, shape index: {}]
  %s6 = sld [smem:[#allocation0]]
  $region53: #{tpu_custom_call.1} parent=0
    _
  %s8 = ssub.s32 1, %s6
  %s9 = scalar_select 0, %s8, %s6
  loop: start=0, step=1, limit=4
  $region2: #{tpu_custom_call.1} parent=0 // loop_pre_header
    _
  $region3: #{tpu_custom_call.1} parent=0 // loop_header
    %s11 = sphi 0, %s15
    %p12 = scmp.ge.s32.totalorder %s11, 4
    %s21 = sphi 0, %s23
    %s24 = sphi 0, %s21
    %s25 = sphi 0, %s24
    %s41 = sphi 0, %s25
    %s45 = sphi 0, %s45
    %s47 = sphi 0, %s45
    %s48 = sphi 0, %s47
    %s62 = sphi 0, %s48
    %s66 = sphi 0, %s66
    %s68 = sphi 0, %s66
    %s69 = sphi 0, %s68
    %s83 = sphi 0, %s69
    %s87 = sphi 0, %s87
    %s89 = sphi 0, %s87
    %s90 = sphi 0, %s89
    %s104 = sphi 0, %s90
    %s108 = sphi 0, %s108
    %s110 = sphi 0, %s108
    %s111 = sphi 0, %s110
    %s125 = sphi 0, %s111
    %s131 = sphi 0, %s133
    %s134 = sphi 0, %s131
    %s135 = sphi 0, %s134
    %s151 = sphi 0, %s135
  $region4: #{tpu_custom_call.1} parent=0 // loop_header_branch
    %14 = sbr.rel (%p12) target = $region8
  $region5: #{tpu_custom_call.1} parent=0 // loop_body
    %s16 = ssub.s32 %s11, 1
    %s17 = ssub.s32 %s11, 2
    %s18 = sadd.s32 %s11, 1
    %s19 = ssub.s32 %s11, %s18
    %p20 = scmp.eq.s32.totalorder %s19, 0
    %s22 = sadd.s32 %s21, 1
    %s23 = scalar_select %p20, %s21, %s22
    %p26 = pneg %p20
    %p27 = scmp.eq.s32.totalorder %s11, 1
    %p28 = por %p26, %p27
    %p29 = scmp.ne.s32.totalorder %s21, %s24
    %p30 = scmp.eq.s32.totalorder %s11, 0
    %p31 = por %p29, %p30
    %p32 = scmp.ne.s32.totalorder %s21, %s24
    %p33 = scmp.eq.s32.totalorder %s16, 1
    %p34 = por %p32, %p33
    %p35 = scmp.ne.s32.totalorder %s24, %s25
    %p36 = scmp.eq.s32.totalorder %s16, 0
    %p37 = por %p35, %p36
    %p38 = scmp.ne.s32.totalorder %s24, %s25
    %p39 = scmp.eq.s32.totalorder %s17, 1
    %p40 = por %p38, %p39
    %p42 = scmp.ne.s32.totalorder %s25, %s41
    %p43 = scmp.eq.s32.totalorder %s17, 0
    %p44 = por %p42, %p43
    %s46 = sadd.s32 %s45, 1
    %p49 = scmp.eq.s32.totalorder %s11, 1
    %p50 = scmp.ne.s32.totalorder %s45, %s47
    %p51 = scmp.eq.s32.totalorder %s11, 0
    %p52 = por %p50, %p51
    %p53 = scmp.ne.s32.totalorder %s45, %s47
    %p54 = scmp.eq.s32.totalorder %s16, 1
    %p55 = por %p53, %p54
    %p56 = scmp.ne.s32.totalorder %s47, %s48
    %p57 = scmp.eq.s32.totalorder %s16, 0
    %p58 = por %p56, %p57
    %p59 = scmp.ne.s32.totalorder %s47, %s48
    %p60 = scmp.eq.s32.totalorder %s17, 1
    %p61 = por %p59, %p60
    %p63 = scmp.ne.s32.totalorder %s48, %s62
    %p64 = scmp.eq.s32.totalorder %s17, 0
    %p65 = por %p63, %p64
    %s67 = sadd.s32 %s66, 1
    %p70 = scmp.eq.s32.totalorder %s11, 1
    %p71 = scmp.ne.s32.totalorder %s66, %s68
    %p72 = scmp.eq.s32.totalorder %s11, 0
    %p73 = por %p71, %p72
    %p74 = scmp.ne.s32.totalorder %s66, %s68
    %p75 = scmp.eq.s32.totalorder %s16, 1
    %p76 = por %p74, %p75
    %p77 = scmp.ne.s32.totalorder %s68, %s69
    %p78 = scmp.eq.s32.totalorder %s16, 0
    %p79 = por %p77, %p78
    %p80 = scmp.ne.s32.totalorder %s68, %s69
    %p81 = scmp.eq.s32.totalorder %s17, 1
    %p82 = por %p80, %p81
    %p84 = scmp.ne.s32.totalorder %s69, %s83
    %p85 = scmp.eq.s32.totalorder %s17, 0
    %p86 = por %p84, %p85
    %s88 = sadd.s32 %s87, 1
    %p91 = scmp.eq.s32.totalorder %s11, 1
    %p92 = scmp.ne.s32.totalorder %s87, %s89
    %p93 = scmp.eq.s32.totalorder %s11, 0
    %p94 = por %p92, %p93
    %p95 = scmp.ne.s32.totalorder %s87, %s89
    %p96 = scmp.eq.s32.totalorder %s16, 1
    %p97 = por %p95, %p96
    %p98 = scmp.ne.s32.totalorder %s89, %s90
    %p99 = scmp.eq.s32.totalorder %s16, 0
    %p100 = por %p98, %p99
    %p101 = scmp.ne.s32.totalorder %s89, %s90
    %p102 = scmp.eq.s32.totalorder %s17, 1
    %p103 = por %p101, %p102
    %p105 = scmp.ne.s32.totalorder %s90, %s104
    %p106 = scmp.eq.s32.totalorder %s17, 0
    %p107 = por %p105, %p106
    %s109 = sadd.s32 %s108, 1
    %p112 = scmp.eq.s32.totalorder %s11, 1
    %p113 = scmp.ne.s32.totalorder %s108, %s110
    %p114 = scmp.eq.s32.totalorder %s11, 0
    %p115 = por %p113, %p114
    %p116 = scmp.ne.s32.totalorder %s108, %s110
    %p117 = scmp.eq.s32.totalorder %s16, 1
    %p118 = por %p116, %p117
    %p119 = scmp.ne.s32.totalorder %s110, %s111
    %p120 = scmp.eq.s32.totalorder %s16, 0
    %p121 = por %p119, %p120
    %p122 = scmp.ne.s32.totalorder %s110, %s111
    %p123 = scmp.eq.s32.totalorder %s17, 1
    %p124 = por %p122, %p123
    %p126 = scmp.ne.s32.totalorder %s111, %s125
    %p127 = scmp.eq.s32.totalorder %s17, 0
    %p128 = por %p126, %p127
    %s129 = ssub.s32 %s11, %s18
    %p130 = scmp.eq.s32.totalorder %s129, 0
    %s132 = sadd.s32 %s131, 1
    %s133 = scalar_select %p130, %s131, %s132
    %p136 = pneg %p130
    %p137 = scmp.eq.s32.totalorder %s11, 1
    %p138 = por %p136, %p137
    %p139 = scmp.ne.s32.totalorder %s131, %s134
    %p140 = scmp.eq.s32.totalorder %s11, 0
    %p141 = por %p139, %p140
    %p142 = scmp.ne.s32.totalorder %s131, %s134
    %p143 = scmp.eq.s32.totalorder %s16, 1
    %p144 = por %p142, %p143
    %p145 = scmp.ne.s32.totalorder %s134, %s135
    %p146 = scmp.eq.s32.totalorder %s16, 0
    %p147 = por %p145, %p146
    %p148 = scmp.ne.s32.totalorder %s134, %s135
    %p149 = scmp.eq.s32.totalorder %s17, 1
    %p150 = por %p148, %p149
    %p152 = scmp.ne.s32.totalorder %s135, %s151
    %p153 = scmp.eq.s32.totalorder %s17, 0
    %p154 = por %p152, %p153
    %p155 = scmp.le.s32.totalorder 1, %s11
    %p156 = scmp.lt.s32.totalorder %s11, 3
    %p157 = pnand %p155, %p156
    %p158 = pneg %p157
    // Predicated region
    $region9: #{tpu_custom_call.1} parent=5 // pred_check
      _
    $region10: #{tpu_custom_call.1} parent=5 // pred_check_branch
      %160 = sbr.rel (%p157) target = $region12
    $region11: #{tpu_custom_call.1} parent=5 // pred_region
      %s161 = ssub.s32 %s11, 1
      // Predicated region
      $region13: #{tpu_custom_call.1} parent=11 // pred_check
        %p162 = pneg %p58
      $region14: #{tpu_custom_call.1} parent=11 // pred_check_branch
        %164 = sbr.rel (%p162) target = $region16
      $region15: #{tpu_custom_call.1} parent=11 // pred_region
        _
      $region16: #{tpu_custom_call.1} parent=11 // pred_fallthru
        _
      // Predicated region
      $region17: #{tpu_custom_call.1} parent=11 // pred_check
        %p165 = pneg %p79
      $region18: #{tpu_custom_call.1} parent=11 // pred_check_branch
        %167 = sbr.rel (%p165) target = $region20
      $region19: #{tpu_custom_call.1} parent=11 // pred_region
        _
      $region20: #{tpu_custom_call.1} parent=11 // pred_fallthru
        _
      // Predicated region
      $region21: #{tpu_custom_call.1} parent=11 // pred_check
        %p168 = pneg %p100
      $region22: #{tpu_custom_call.1} parent=11 // pred_check_branch
        %170 = sbr.rel (%p168) target = $region24
      $region23: #{tpu_custom_call.1} parent=11 // pred_region
        _
      $region24: #{tpu_custom_call.1} parent=11 // pred_fallthru
        _
      // Predicated region
      $region25: #{tpu_custom_call.1} parent=11 // pred_check
        %p171 = pneg %p121
      $region26: #{tpu_custom_call.1} parent=11 // pred_check_branch
        %173 = sbr.rel (%p171) target = $region28
      $region27: #{tpu_custom_call.1} parent=11 // pred_region
        _
      $region28: #{tpu_custom_call.1} parent=11 // pred_fallthru
        _
    $region12: #{tpu_custom_call.1} parent=5 // pred_fallthru
      _
    %p174 = scmp.lt.s32.totalorder %s11, 2
    // Predicated region
    $region29: #{tpu_custom_call.1} parent=5 // pred_check
      %p175 = pneg %p174
    $region30: #{tpu_custom_call.1} parent=5 // pred_check_branch
      %177 = sbr.rel (%p175) target = $region32
    $region31: #{tpu_custom_call.1} parent=5 // pred_region
      // Predicated region
      $region33: #{tpu_custom_call.1} parent=31 // pred_check
        %p178 = pneg %p31
      $region34: #{tpu_custom_call.1} parent=31 // pred_check_branch
        %180 = sbr.rel (%p178) target = $region36
      $region35: #{tpu_custom_call.1} parent=31 // pred_region
        %s181 = smul.u32 8, %s11
        %p182 = scmp.lt.s32.totalorder %s181, 15
        %s183 = scalar_select %p182, %s181, 15
        %s184 = smul.addr %s183, 4
        %s185 = scalar_lea.vmem %s0, %s184
        %s186 = smul.u32 8, %s11
      $region36: #{tpu_custom_call.1} parent=31 // pred_fallthru
        _
    $region32: #{tpu_custom_call.1} parent=5 // pred_fallthru
      _
    %p187 = scmp.le.s32.totalorder 1, %s11
    %p188 = scmp.lt.s32.totalorder %s11, 3
    %p189 = pnand %p187, %p188
    %p190 = pneg %p189
    // Predicated region
    $region37: #{tpu_custom_call.1} parent=5 // pred_check
      _
    $region38: #{tpu_custom_call.1} parent=5 // pred_check_branch
      %192 = sbr.rel (%p189) target = $region40
    $region39: #{tpu_custom_call.1} parent=5 // pred_region
      %s193 = ssub.s32 %s11, 1
      %s194 = smul.u32 8, %s16
      %p195 = scmp.lt.s32.totalorder %s194, 15
      %s196 = scalar_select %p195, %s194, 15
      %s197 = smul.addr %s196, 4
      %s198 = scalar_lea.vmem %s0, %s197
      %p199 = pneg %p37
      %p200 = pneg %p34
      %p201 = pneg %p58
      %p202 = pneg %p55
      %p203 = pneg %p79
      %p204 = pneg %p76
      %p205 = pneg %p100
      %p206 = pneg %p97
      %p207 = pneg %p121
      %p208 = pneg %p118
      %p209 = pneg %p147
      %p210 = pneg %p144
      %s211 = smul.u32 8, %s16
      %p212 = scmp.lt.s32.totalorder %s211, 15
      %s213 = scalar_select %p212, %s211, 15
      %s214 = smul.addr %s213, 4
      %s215 = scalar_lea.vmem %s5, %s214
      %s216 = smul.u32 8, %s16
      %p217 = scmp.lt.s32.totalorder %s216, 15
      %s218 = scalar_select %p217, %s216, 15
      %s219 = smul.addr %s218, 4
      %s220 = scalar_lea.vmem %s0, %s219
      %s221 = smul.u32 8, %s16
      %s222 = smul.u32 8, %s16
      %p223 = scmp.lt.s32.totalorder %s222, 15
      %s224 = scalar_select %p223, %s222, 15
      %s225 = smul.addr %s224, 4
      %s226 = scalar_lea.vmem %s5, %s225
      %s227 = smul.u32 8, %s16
      %v229 = vld [vmem:[%s220] sm:$0xf]
      %v230 = vld [vmem:[%s220 + $0x4] sm:$0xf]
      %v231 = vld [vmem:[%s220 + $0x8] sm:$0xf]
      %v232 = vld [vmem:[%s220 + $0xc] sm:$0xf]
      %v233 = vld [vmem:[%s220 + $0x10] sm:$0xf]
      %v234 = vld [vmem:[%s220 + $0x14] sm:$0xf]
      %v235 = vld [vmem:[%s220 + $0x18] sm:$0xf]
      %v236 = vld [vmem:[%s220 + $0x1c] sm:$0xf]
      %v237 = vld [vmem:[%s1] sm:$0xf]
      %v238 = vld [vmem:[%s1 + $0x4] sm:$0xf]
      %v239 = vld [vmem:[%s1 + $0x8] sm:$0xf]
      %v240 = vld [vmem:[%s1 + $0xc] sm:$0xf]
      %v241 = vld [vmem:[%s2] sm:$0x1]
      %v243 = vlaneseq
      %v244 = vshrl.u32 %v243, 7
      %v245 = vsub.s32 0, %v244
      %v246 = vrot.slane %v241, %v245
      %v256 = vunpack.c.l.b16 %v229
      %v257 = vunpack.c.l.b16 %v230
      %v258 = vunpack.c.l.b16 %v231
      %v259 = vunpack.c.l.b16 %v232
      %v260 = vunpack.c.l.b16 %v233
      %v261 = vunpack.c.l.b16 %v234
      %v262 = vunpack.c.l.b16 %v235
      %v263 = vunpack.c.l.b16 %v236
      %v264 = vpack.c.b16 %v257, %v256
      %v265 = vpack.c.b16 %v259, %v258
      %v266 = vpack.c.b16 %v261, %v260
      %v267 = vpack.c.b16 %v263, %v262
      %v272 = vunpack.c.l.b16 %v237
      %v273 = vunpack.c.l.b16 %v238
      %v274 = vunpack.c.l.b16 %v239
      %v275 = vunpack.c.l.b16 %v240
      %v276 = vpack.c.b16 %v273, %v272
      %v277 = vpack.c.b16 %v275, %v274
      %vm280 = vcmask 261120
      %v282 = vsel %vm280, %v264, 0
      %v285 = vsel %vm280, %v265, 0
      %v288 = vsel %vm280, %v266, 0
      %v291 = vsel %vm280, %v267, 0
      %293 = vmatprep.subr.bf16.mxu0 0
      %294 = vmatpush1.bf16.msra.mxu0 %v276
      %295 = vmatprep.subr.bf16.mxu0 0
      %296 = vmatpush1.bf16.msra.mxu0 %v277
      %297 = vmatprep.subr.bf16.mxu0 0
      %298 = vmatpush1.bf16.msra.mxu0 0
      %299 = vmatprep.subr.bf16.mxu0 0
      %300 = vmatpush1.bf16.msra.mxu0 0
      %301 = vmatprep.subr.bf16.mxu0 0
      %302 = vmatpush1.bf16.msra.mxu0 0
      %303 = vmatprep.subr.bf16.mxu0 0
      %304 = vmatpush1.bf16.msra.mxu0 0
      %305 = vmatprep.subr.bf16.mxu0 0
      %306 = vmatpush1.bf16.msra.mxu0 0
      %307 = vmatprep.subr.bf16.mxu0 0
      %308 = vmatpush1.bf16.msra.mxu0 0
      %309 = vmatprep.subr.bf16.mxu0 0
      %310 = vmatpush1.bf16.msra.mxu0 0
      %311 = vmatprep.subr.bf16.mxu0 0
      %312 = vmatpush1.bf16.msra.mxu0 0
      %313 = vmatprep.subr.bf16.mxu0 0
      %314 = vmatpush1.bf16.msra.mxu0 0
      %315 = vmatprep.subr.bf16.mxu0 0
      %316 = vmatpush1.bf16.msra.mxu0 0
      %317 = vmatprep.subr.bf16.mxu0 0
      %318 = vmatpush1.bf16.msra.mxu0 0
      %319 = vmatprep.subr.bf16.mxu0 0
      %320 = vmatpush1.bf16.msra.mxu0 0
      %321 = vmatprep.subr.bf16.mxu0 0
      %322 = vmatpush1.bf16.msra.mxu0 0
      %323 = vmatprep.subr.bf16.mxu0 0
      %324 = vmatpush1.bf16.msra.mxu0 0
      %325 = vmatprep.mubr.bf16.mxu0 0
      %326 = vmatmul.mubr.bf16.gmra.mrb[0].mxu0 %v282
      %v327 = vpop.f32.mrb[0].mxu0
      %v328 = vadd.f32 %v246, %v327
      %v329 = vpop.f32.mrb[0].mxu0
      %v330 = vpop.f32.mrb[0].mxu0
      %v331 = vadd.f32 %v246, %v330
      %v332 = vpop.f32.mrb[0].mxu0
      %333 = vmatprep.mubr.bf16.mxu0 0
      %334 = vmatmul.mubr.bf16.gmra.mrb[0].mxu0 %v285
      %v335 = vpop.f32.mrb[0].mxu0
      %v336 = vadd.f32 %v246, %v335
      %v337 = vpop.f32.mrb[0].mxu0
      %v338 = vpop.f32.mrb[0].mxu0
      %v339 = vadd.f32 %v246, %v338
      %v340 = vpop.f32.mrb[0].mxu0
      %341 = vmatprep.mubr.bf16.mxu0 0
      %342 = vmatmul.mubr.bf16.gmra.mrb[0].mxu0 %v288
      %v343 = vpop.f32.mrb[0].mxu0
      %v344 = vadd.f32 %v246, %v343
      %v345 = vpop.f32.mrb[0].mxu0
      %v346 = vpop.f32.mrb[0].mxu0
      %v347 = vadd.f32 %v246, %v346
      %v348 = vpop.f32.mrb[0].mxu0
      %349 = vmatprep.mubr.bf16.mxu0 0
      %350 = vmatmul.mubr.bf16.gmra.mrb[0].mxu0 %v291
      %v351 = vpop.f32.mrb[0].mxu0
      %v352 = vadd.f32 %v246, %v351
      %v353 = vpop.f32.mrb[0].mxu0
      %v354 = vpop.f32.mrb[0].mxu0
      %v355 = vadd.f32 %v246, %v354
      %v356 = vpop.f32.mrb[0].mxu0
      %357 = vdwg.mxu0
      %v358 = vpack.c.bf16 %v331, %v328
      %v359 = vpack.c.bf16 %v339, %v336
      %v360 = vpack.c.bf16 %v347, %v344
      %v361 = vpack.c.bf16 %v355, %v352
      %363 = vrot.lane.b32.xlu0 %v358, 96
      %v364 = vpop.permute.xlu0 %363
      %vm365 = vcmask 64512
      %v367 = vsel %vm365, %v358, 0
      %v370 = vsel %vm365, %v364, 0
      %372 = vmatprep.subr.bf16.mxu0 0
      %373 = vmatpush1.bf16.xpose.msra.mxu0 %v370
      %374 = vmatprep.subr.bf16.mxu0 0
      %375 = vmatpush1.bf16.xpose.msra.mxu0 0
      %376 = vmatprep.subr.bf16.mxu0 0
      %377 = vmatpush1.bf16.xpose.msra.mxu0 0
      %378 = vmatprep.subr.bf16.mxu0 0
      %379 = vmatpush1.bf16.xpose.msra.mxu0 0
      %380 = vmatprep.subr.bf16.mxu0 0
      %381 = vmatpush1.bf16.xpose.msra.mxu0 0
      %382 = vmatprep.subr.bf16.mxu0 0
      %383 = vmatpush1.bf16.xpose.msra.mxu0 0
      %384 = vmatprep.subr.bf16.mxu0 0
      %385 = vmatpush1.bf16.xpose.msra.mxu0 0
      %386 = vmatprep.subr.bf16.mxu0 0
      %387 = vmatpush1.bf16.xpose.msra.mxu0 0
      %388 = vmatprep.subr.bf16.mxu0 0
      %389 = vmatpush1.bf16.xpose.msra.mxu0 0
      %390 = vmatprep.subr.bf16.mxu0 0
      %391 = vmatpush1.bf16.xpose.msra.mxu0 0
      %392 = vmatprep.subr.bf16.mxu0 0
      %393 = vmatpush1.bf16.xpose.msra.mxu0 0
      %394 = vmatprep.subr.bf16.mxu0 0
      %395 = vmatpush1.bf16.xpose.msra.mxu0 0
      %396 = vmatprep.subr.bf16.mxu0 0
      %397 = vmatpush1.bf16.xpose.msra.mxu0 0
      %398 = vmatprep.subr.bf16.mxu0 0
      %399 = vmatpush1.bf16.xpose.msra.mxu0 0
      %400 = vmatprep.subr.bf16.mxu0 0
      %401 = vmatpush1.bf16.xpose.msra.mxu0 0
      %402 = vmatprep.subr.bf16.mxu0 0
      %403 = vmatpush1.bf16.xpose.msra.mxu0 0
      %404 = vmatprep.mubr.bf16.mxu0 0
      %405 = vmatmul.mubr.bf16.gmra.mrb[0].mxu0 %v367
      %v406 = vpop.f32.mrb[0].mxu0
      %v407 = vadd.f32 0.0, %v406
      %v408 = vpop.f32.mrb[0].mxu0
      %v409 = vpop.f32.mrb[0].mxu0
      %v410 = vadd.f32 0.0, %v409
      %v411 = vpop.f32.mrb[0].mxu0
      %412 = vdwg.mxu0
      %414 = vrot.lane.b32.xlu0 %v359, 96
      %v415 = vpop.permute.xlu0 %414
      %v417 = vsel %vm365, %v359, 0
      %v420 = vsel %vm365, %v415, 0
      %422 = vmatprep.subr.bf16.mxu0 0
      %423 = vmatpush1.bf16.xpose.msra.mxu0 %v420
      %424 = vmatprep.subr.bf16.mxu0 0
      %425 = vmatpush1.bf16.xpose.msra.mxu0 0
      %426 = vmatprep.subr.bf16.mxu0 0
      %427 = vmatpush1.bf16.xpose.msra.mxu0 0
      %428 = vmatprep.subr.bf16.mxu0 0
      %429 = vmatpush1.bf16.xpose.msra.mxu0 0
      %430 = vmatprep.subr.bf16.mxu0 0
      %431 = vmatpush1.bf16.xpose.msra.mxu0 0
      %432 = vmatprep.subr.bf16.mxu0 0
      %433 = vmatpush1.bf16.xpose.msra.mxu0 0
      %434 = vmatprep.subr.bf16.mxu0 0
      %435 = vmatpush1.bf16.xpose.msra.mxu0 0
      %436 = vmatprep.subr.bf16.mxu0 0
      %437 = vmatpush1.bf16.xpose.msra.mxu0 0
      %438 = vmatprep.subr.bf16.mxu0 0
      %439 = vmatpush1.bf16.xpose.msra.mxu0 0
      %440 = vmatprep.subr.bf16.mxu0 0
      %441 = vmatpush1.bf16.xpose.msra.mxu0 0
      %442 = vmatprep.subr.bf16.mxu0 0
      %443 = vmatpush1.bf16.xpose.msra.mxu0 0
      %444 = vmatprep.subr.bf16.mxu0 0
      %445 = vmatpush1.bf16.xpose.msra.mxu0 0
      %446 = vmatprep.subr.bf16.mxu0 0
      %447 = vmatpush1.bf16.xpose.msra.mxu0 0
      %448 = vmatprep.subr.bf16.mxu0 0
      %449 = vmatpush1.bf16.xpose.msra.mxu0 0
      %450 = vmatprep.subr.bf16.mxu0 0
      %451 = vmatpush1.bf16.xpose.msra.mxu0 0
      %452 = vmatprep.subr.bf16.mxu0 0
      %453 = vmatpush1.bf16.xpose.msra.mxu0 0
      %454 = vmatprep.mubr.bf16.mxu0 0
      %455 = vmatmul.mubr.bf16.gmra.mrb[0].mxu0 %v417
      %v456 = vpop.f32.mrb[0].mxu0
      %v457 = vadd.f32 0.0, %v456
      %v458 = vpop.f32.mrb[0].mxu0
      %v459 = vpop.f32.mrb[0].mxu0
      %v460 = vadd.f32 0.0, %v459
      %v461 = vpop.f32.mrb[0].mxu0
      %462 = vdwg.mxu0
      %464 = vrot.lane.b32.xlu0 %v360, 96
      %v465 = vpop.permute.xlu0 %464
      %v467 = vsel %vm365, %v360, 0
      %v470 = vsel %vm365, %v465, 0
      %472 = vmatprep.subr.bf16.mxu0 0
      %473 = vmatpush1.bf16.xpose.msra.mxu0 %v470
      %474 = vmatprep.subr.bf16.mxu0 0
      %475 = vmatpush1.bf16.xpose.msra.mxu0 0
      %476 = vmatprep.subr.bf16.mxu0 0
      %477 = vmatpush1.bf16.xpose.msra.mxu0 0
      %478 = vmatprep.subr.bf16.mxu0 0
      %479 = vmatpush1.bf16.xpose.msra.mxu0 0
      %480 = vmatprep.subr.bf16.mxu0 0
      %481 = vmatpush1.bf16.xpose.msra.mxu0 0
      %482 = vmatprep.subr.bf16.mxu0 0
      %483 = vmatpush1.bf16.xpose.msra.mxu0 0
      %484 = vmatprep.subr.bf16.mxu0 0
      %485 = vmatpush1.bf16.xpose.msra.mxu0 0
      %486 = vmatprep.subr.bf16.mxu0 0
      %487 = vmatpush1.bf16.xpose.msra.mxu0 0
      %488 = vmatprep.subr.bf16.mxu0 0
      %489 = vmatpush1.bf16.xpose.msra.mxu0 0
      %490 = vmatprep.subr.bf16.mxu0 0
      %491 = vmatpush1.bf16.xpose.msra.mxu0 0
      %492 = vmatprep.subr.bf16.mxu0 0
      %493 = vmatpush1.bf16.xpose.msra.mxu0 0
      %494 = vmatprep.subr.bf16.mxu0 0
      %495 = vmatpush1.bf16.xpose.msra.mxu0 0
      %496 = vmatprep.subr.bf16.mxu0 0
      %497 = vmatpush1.bf16.xpose.msra.mxu0 0
      %498 = vmatprep.subr.bf16.mxu0 0
      %499 = vmatpush1.bf16.xpose.msra.mxu0 0
      %500 = vmatprep.subr.bf16.mxu0 0
      %501 = vmatpush1.bf16.xpose.msra.mxu0 0
      %502 = vmatprep.subr.bf16.mxu0 0
      %503 = vmatpush1.bf16.xpose.msra.mxu0 0
      %504 = vmatprep.mubr.bf16.mxu0 0
      %505 = vmatmul.mubr.bf16.gmra.mrb[0].mxu0 %v467
      %v506 = vpop.f32.mrb[0].mxu0
      %v507 = vadd.f32 0.0, %v506
      %v508 = vpop.f32.mrb[0].mxu0
      %v509 = vpop.f32.mrb[0].mxu0
      %v510 = vadd.f32 0.0, %v509
      %v511 = vpop.f32.mrb[0].mxu0
      %512 = vdwg.mxu0
      %514 = vrot.lane.b32.xlu0 %v361, 96
      %v515 = vpop.permute.xlu0 %514
      %v517 = vsel %vm365, %v361, 0
      %v520 = vsel %vm365, %v515, 0
      %522 = vmatprep.subr.bf16.mxu0 0
      %523 = vmatpush1.bf16.xpose.msra.mxu0 %v520
      %524 = vmatprep.subr.bf16.mxu0 0
      %525 = vmatpush1.bf16.xpose.msra.mxu0 0
      %526 = vmatprep.subr.bf16.mxu0 0
      %527 = vmatpush1.bf16.xpose.msra.mxu0 0
      %528 = vmatprep.subr.bf16.mxu0 0
      %529 = vmatpush1.bf16.xpose.msra.mxu0 0
      %530 = vmatprep.subr.bf16.mxu0 0
      %531 = vmatpush1.bf16.xpose.msra.mxu0 0
      %532 = vmatprep.subr.bf16.mxu0 0
      %533 = vmatpush1.bf16.xpose.msra.mxu0 0
      %534 = vmatprep.subr.bf16.mxu0 0
      %535 = vmatpush1.bf16.xpose.msra.mxu0 0
      %536 = vmatprep.subr.bf16.mxu0 0
      %537 = vmatpush1.bf16.xpose.msra.mxu0 0
      %538 = vmatprep.subr.bf16.mxu0 0
      %539 = vmatpush1.bf16.xpose.msra.mxu0 0
      %540 = vmatprep.subr.bf16.mxu0 0
      %541 = vmatpush1.bf16.xpose.msra.mxu0 0
      %542 = vmatprep.subr.bf16.mxu0 0
      %543 = vmatpush1.bf16.xpose.msra.mxu0 0
      %544 = vmatprep.subr.bf16.mxu0 0
      %545 = vmatpush1.bf16.xpose.msra.mxu0 0
      %546 = vmatprep.subr.bf16.mxu0 0
      %547 = vmatpush1.bf16.xpose.msra.mxu0 0
      %548 = vmatprep.subr.bf16.mxu0 0
      %549 = vmatpush1.bf16.xpose.msra.mxu0 0
      %550 = vmatprep.subr.bf16.mxu0 0
      %551 = vmatpush1.bf16.xpose.msra.mxu0 0
      %552 = vmatprep.subr.bf16.mxu0 0
      %553 = vmatpush1.bf16.xpose.msra.mxu0 0
      %554 = vmatprep.mubr.bf16.mxu0 0
      %555 = vmatmul.mubr.bf16.gmra.mrb[0].mxu0 %v517
      %v556 = vpop.f32.mrb[0].mxu0
      %v557 = vadd.f32 0.0, %v556
      %v558 = vpop.f32.mrb[0].mxu0
      %v559 = vpop.f32.mrb[0].mxu0
      %v560 = vadd.f32 0.0, %v559
      %v561 = vpop.f32.mrb[0].mxu0
      %562 = vdwg.mxu0
      %vm563 = vcmask 130048
      %v564 = vsel %vm563, %v407, -inf
      %565 = vmax.xlane.f32.xlu0 %v564
      %v566 = vpop.xlane.xlu0 %565
      %v567 = vsel %vm563, %v410, -inf
      %568 = vmax.xlane.f32.xlu0 %v567
      %v569 = vpop.xlane.xlu0 %568
      %v570 = vsel %vm563, %v457, -inf
      %571 = vmax.xlane.f32.xlu0 %v570
      %v572 = vpop.xlane.xlu0 %571
      %v573 = vsel %vm563, %v460, -inf
      %574 = vmax.xlane.f32.xlu0 %v573
      %v575 = vpop.xlane.xlu0 %574
      %v576 = vsel %vm563, %v507, -inf
      %577 = vmax.xlane.f32.xlu0 %v576
      %v578 = vpop.xlane.xlu0 %577
      %v579 = vsel %vm563, %v510, -inf
      %580 = vmax.xlane.f32.xlu0 %v579
      %v581 = vpop.xlane.xlu0 %580
      %v582 = vsel %vm563, %v557, -inf
      %583 = vmax.xlane.f32.xlu0 %v582
      %v584 = vpop.xlane.xlu0 %583
      %v585 = vsel %vm563, %v560, -inf
      %586 = vmax.xlane.f32.xlu0 %v585
      %v587 = vpop.xlane.xlu0 %586
      %v588 = vsub.f32 %v407, %v566
      %v589 = vsub.f32 %v410, %v569
      %v590 = vsub.f32 %v457, %v572
      %v591 = vsub.f32 %v460, %v575
      %v592 = vsub.f32 %v507, %v578
      %v593 = vsub.f32 %v510, %v581
      %v594 = vsub.f32 %v557, %v584
      %v595 = vsub.f32 %v560, %v587
      %v596 = vmul.f32 %v588, 1.442695
      %v597 = vpow.pop %v596
      %v598 = vmul.f32 %v589, 1.442695
      %v599 = vpow.pop %v598
      %v600 = vmul.f32 %v590, 1.442695
      %v601 = vpow.pop %v600
      %v602 = vmul.f32 %v591, 1.442695
      %v603 = vpow.pop %v602
      %v604 = vmul.f32 %v592, 1.442695
      %v605 = vpow.pop %v604
      %v606 = vmul.f32 %v593, 1.442695
      %v607 = vpow.pop %v606
      %v608 = vmul.f32 %v594, 1.442695
      %v609 = vpow.pop %v608
      %v610 = vmul.f32 %v595, 1.442695
      %v611 = vpow.pop %v610
      %v612 = vsel %vm563, %v597, 0.0
      %613 = vadd.xlane.f32.xlu0 %v612
      %v614 = vpop.xlane.xlu0 %613
      %v615 = vsel %vm563, %v599, 0.0
      %616 = vadd.xlane.f32.xlu0 %v615
      %v617 = vpop.xlane.xlu0 %616
      %v618 = vsel %vm563, %v601, 0.0
      %619 = vadd.xlane.f32.xlu0 %v618
      %v620 = vpop.xlane.xlu0 %619
      %v621 = vsel %vm563, %v603, 0.0
      %622 = vadd.xlane.f32.xlu0 %v621
      %v623 = vpop.xlane.xlu0 %622
      %v624 = vsel %vm563, %v605, 0.0
      %625 = vadd.xlane.f32.xlu0 %v624
      %v626 = vpop.xlane.xlu0 %625
      %v627 = vsel %vm563, %v607, 0.0
      %628 = vadd.xlane.f32.xlu0 %v627
      %v629 = vpop.xlane.xlu0 %628
      %v630 = vsel %vm563, %v609, 0.0
      %631 = vadd.xlane.f32.xlu0 %v630
      %v632 = vpop.xlane.xlu0 %631
      %v633 = vsel %vm563, %v611, 0.0
      %634 = vadd.xlane.f32.xlu0 %v633
      %v635 = vpop.xlane.xlu0 %634
      %v636 = vpack.c.bf16 %v599, %v597
      %v637 = vpack.c.bf16 %v603, %v601
      %v638 = vpack.c.bf16 %v607, %v605
      %v639 = vpack.c.bf16 %v611, %v609
      %640 = vrot.lane.b32.xlu0 %v358, 64
      %v641 = vpop.permute.xlu0 %640
      %v644 = vsel %vm563, %v636, 0
      %646 = vmatprep.subr.bf16.mxu0 0
      %647 = vmatpush1.bf16.msra.mxu0 %v641
      %648 = vmatprep.subr.bf16.mxu0 0
      %649 = vmatpush1.bf16.msra.mxu0 0
      %650 = vmatprep.subr.bf16.mxu0 0
      %651 = vmatpush1.bf16.msra.mxu0 0
      %652 = vmatprep.subr.bf16.mxu0 0
      %653 = vmatpush1.bf16.msra.mxu0 0
      %654 = vmatprep.subr.bf16.mxu0 0
      %655 = vmatpush1.bf16.msra.mxu0 0
      %656 = vmatprep.subr.bf16.mxu0 0
      %657 = vmatpush1.bf16.msra.mxu0 0
      %658 = vmatprep.subr.bf16.mxu0 0
      %659 = vmatpush1.bf16.msra.mxu0 0
      %660 = vmatprep.subr.bf16.mxu0 0
      %661 = vmatpush1.bf16.msra.mxu0 0
      %662 = vmatprep.subr.bf16.mxu0 0
      %663 = vmatpush1.bf16.msra.mxu0 0
      %664 = vmatprep.subr.bf16.mxu0 0
      %665 = vmatpush1.bf16.msra.mxu0 0
      %666 = vmatprep.subr.bf16.mxu0 0
      %667 = vmatpush1.bf16.msra.mxu0 0
      %668 = vmatprep.subr.bf16.mxu0 0
      %669 = vmatpush1.bf16.msra.mxu0 0
      %670 = vmatprep.subr.bf16.mxu0 0
      %671 = vmatpush1.bf16.msra.mxu0 0
      %672 = vmatprep.subr.bf16.mxu0 0
      %673 = vmatpush1.bf16.msra.mxu0 0
      %674 = vmatprep.subr.bf16.mxu0 0
      %675 = vmatpush1.bf16.msra.mxu0 0
      %676 = vmatprep.subr.bf16.mxu0 0
      %677 = vmatpush1.bf16.msra.mxu0 0
      %678 = vmatprep.mubr.bf16.mxu0 0
      %679 = vmatmul.mubr.bf16.gmra.mrb[0].mxu0 %v644
      %v680 = vpop.f32.mrb[0].mxu0
      %v681 = vadd.f32 0.0, %v680
      %v682 = vpop.f32.mrb[0].mxu0
      %v683 = vpop.f32.mrb[0].mxu0
      %v684 = vadd.f32 0.0, %v683
      %v685 = vpop.f32.mrb[0].mxu0
      %686 = vdwg.mxu0
      %687 = vrot.lane.b32.xlu0 %v359, 64
      %v688 = vpop.permute.xlu0 %687
      %v691 = vsel %vm563, %v637, 0
      %693 = vmatprep.subr.bf16.mxu0 0
      %694 = vmatpush1.bf16.msra.mxu0 %v688
      %695 = vmatprep.subr.bf16.mxu0 0
      %696 = vmatpush1.bf16.msra.mxu0 0
      %697 = vmatprep.subr.bf16.mxu0 0
      %698 = vmatpush1.bf16.msra.mxu0 0
      %699 = vmatprep.subr.bf16.mxu0 0
      %700 = vmatpush1.bf16.msra.mxu0 0
      %701 = vmatprep.subr.bf16.mxu0 0
      %702 = vmatpush1.bf16.msra.mxu0 0
      %703 = vmatprep.subr.bf16.mxu0 0
      %704 = vmatpush1.bf16.msra.mxu0 0
      %705 = vmatprep.subr.bf16.mxu0 0
      %706 = vmatpush1.bf16.msra.mxu0 0
      %707 = vmatprep.subr.bf16.mxu0 0
      %708 = vmatpush1.bf16.msra.mxu0 0
      %709 = vmatprep.subr.bf16.mxu0 0
      %710 = vmatpush1.bf16.msra.mxu0 0
      %711 = vmatprep.subr.bf16.mxu0 0
      %712 = vmatpush1.bf16.msra.mxu0 0
      %713 = vmatprep.subr.bf16.mxu0 0
      %714 = vmatpush1.bf16.msra.mxu0 0
      %715 = vmatprep.subr.bf16.mxu0 0
      %716 = vmatpush1.bf16.msra.mxu0 0
      %717 = vmatprep.subr.bf16.mxu0 0
      %718 = vmatpush1.bf16.msra.mxu0 0
      %719 = vmatprep.subr.bf16.mxu0 0
      %720 = vmatpush1.bf16.msra.mxu0 0
      %721 = vmatprep.subr.bf16.mxu0 0
      %722 = vmatpush1.bf16.msra.mxu0 0
      %723 = vmatprep.subr.bf16.mxu0 0
      %724 = vmatpush1.bf16.msra.mxu0 0
      %725 = vmatprep.mubr.bf16.mxu0 0
      %726 = vmatmul.mubr.bf16.gmra.mrb[0].mxu0 %v691
      %v727 = vpop.f32.mrb[0].mxu0
      %v728 = vadd.f32 0.0, %v727
      %v729 = vpop.f32.mrb[0].mxu0
      %v730 = vpop.f32.mrb[0].mxu0
      %v731 = vadd.f32 0.0, %v730
      %v732 = vpop.f32.mrb[0].mxu0
      %733 = vdwg.mxu0
      %734 = vrot.lane.b32.xlu0 %v360, 64
      %v735 = vpop.permute.xlu0 %734
      %v738 = vsel %vm563, %v638, 0
      %740 = vmatprep.subr.bf16.mxu0 0
      %741 = vmatpush1.bf16.msra.mxu0 %v735
      %742 = vmatprep.subr.bf16.mxu0 0
      %743 = vmatpush1.bf16.msra.mxu0 0
      %744 = vmatprep.subr.bf16.mxu0 0
      %745 = vmatpush1.bf16.msra.mxu0 0
      %746 = vmatprep.subr.bf16.mxu0 0
      %747 = vmatpush1.bf16.msra.mxu0 0
      %748 = vmatprep.subr.bf16.mxu0 0
      %749 = vmatpush1.bf16.msra.mxu0 0
      %750 = vmatprep.subr.bf16.mxu0 0
      %751 = vmatpush1.bf16.msra.mxu0 0
      %752 = vmatprep.subr.bf16.mxu0 0
      %753 = vmatpush1.bf16.msra.mxu0 0
      %754 = vmatprep.subr.bf16.mxu0 0
      %755 = vmatpush1.bf16.msra.mxu0 0
      %756 = vmatprep.subr.bf16.mxu0 0
      %757 = vmatpush1.bf16.msra.mxu0 0
      %758 = vmatprep.subr.bf16.mxu0 0
      %759 = vmatpush1.bf16.msra.mxu0 0
      %760 = vmatprep.subr.bf16.mxu0 0
      %761 = vmatpush1.bf16.msra.mxu0 0
      %762 = vmatprep.subr.bf16.mxu0 0
      %763 = vmatpush1.bf16.msra.mxu0 0
      %764 = vmatprep.subr.bf16.mxu0 0
      %765 = vmatpush1.bf16.msra.mxu0 0
      %766 = vmatprep.subr.bf16.mxu0 0
      %767 = vmatpush1.bf16.msra.mxu0 0
      %768 = vmatprep.subr.bf16.mxu0 0
      %769 = vmatpush1.bf16.msra.mxu0 0
      %770 = vmatprep.subr.bf16.mxu0 0
      %771 = vmatpush1.bf16.msra.mxu0 0
      %772 = vmatprep.mubr.bf16.mxu0 0
      %773 = vmatmul.mubr.bf16.gmra.mrb[0].mxu0 %v738
      %v774 = vpop.f32.mrb[0].mxu0
      %v775 = vadd.f32 0.0, %v774
      %v776 = vpop.f32.mrb[0].mxu0
      %v777 = vpop.f32.mrb[0].mxu0
      %v778 = vadd.f32 0.0, %v777
      %v779 = vpop.f32.mrb[0].mxu0
      %780 = vdwg.mxu0
      %781 = vrot.lane.b32.xlu0 %v361, 64
      %v782 = vpop.permute.xlu0 %781
      %v785 = vsel %vm563, %v639, 0
      %787 = vmatprep.subr.bf16.mxu0 0
      %788 = vmatpush1.bf16.msra.mxu0 %v782
      %789 = vmatprep.subr.bf16.mxu0 0
      %790 = vmatpush1.bf16.msra.mxu0 0
      %791 = vmatprep.subr.bf16.mxu0 0
      %792 = vmatpush1.bf16.msra.mxu0 0
      %793 = vmatprep.subr.bf16.mxu0 0
      %794 = vmatpush1.bf16.msra.mxu0 0
      %795 = vmatprep.subr.bf16.mxu0 0
      %796 = vmatpush1.bf16.msra.mxu0 0
      %797 = vmatprep.subr.bf16.mxu0 0
      %798 = vmatpush1.bf16.msra.mxu0 0
      %799 = vmatprep.subr.bf16.mxu0 0
      %800 = vmatpush1.bf16.msra.mxu0 0
      %801 = vmatprep.subr.bf16.mxu0 0
      %802 = vmatpush1.bf16.msra.mxu0 0
      %803 = vmatprep.subr.bf16.mxu0 0
      %804 = vmatpush1.bf16.msra.mxu0 0
      %805 = vmatprep.subr.bf16.mxu0 0
      %806 = vmatpush1.bf16.msra.mxu0 0
      %807 = vmatprep.subr.bf16.mxu0 0
      %808 = vmatpush1.bf16.msra.mxu0 0
      %809 = vmatprep.subr.bf16.mxu0 0
      %810 = vmatpush1.bf16.msra.mxu0 0
      %811 = vmatprep.subr.bf16.mxu0 0
      %812 = vmatpush1.bf16.msra.mxu0 0
      %813 = vmatprep.subr.bf16.mxu0 0
      %814 = vmatpush1.bf16.msra.mxu0 0
      %815 = vmatprep.subr.bf16.mxu0 0
      %816 = vmatpush1.bf16.msra.mxu0 0
      %817 = vmatprep.subr.bf16.mxu0 0
      %818 = vmatpush1.bf16.msra.mxu0 0
      %819 = vmatprep.mubr.bf16.mxu0 0
      %820 = vmatmul.mubr.bf16.gmra.mrb[0].mxu0 %v785
      %v821 = vpop.f32.mrb[0].mxu0
      %v822 = vadd.f32 0.0, %v821
      %v823 = vpop.f32.mrb[0].mxu0
      %v824 = vpop.f32.mrb[0].mxu0
      %v825 = vadd.f32 0.0, %v824
      %v826 = vpop.f32.mrb[0].mxu0
      %827 = vdwg.mxu0
      %v828 = vrcp.pop %v614
      %v829 = vrcp.pop %v617
      %v830 = vrcp.pop %v620
      %v831 = vrcp.pop %v623
      %v832 = vrcp.pop %v626
      %v833 = vrcp.pop %v629
      %v834 = vrcp.pop %v632
      %v835 = vrcp.pop %v635
      %v836 = vmul.f32 %v681, %v828
      %v837 = vmul.f32 %v684, %v829
      %v838 = vmul.f32 %v728, %v830
      %v839 = vmul.f32 %v731, %v831
      %v840 = vmul.f32 %v775, %v832
      %v841 = vmul.f32 %v778, %v833
      %v842 = vmul.f32 %v822, %v834
      %v843 = vmul.f32 %v825, %v835
      %v844 = vpack.c.bf16 %v837, %v836
      %v845 = vpack.c.bf16 %v839, %v838
      %v846 = vpack.c.bf16 %v841, %v840
      %v847 = vpack.c.bf16 %v843, %v842
      %848 = vrot.lane.b32.xlu0 %v358, 120
      %v849 = vpop.permute.xlu0 %848
      %850 = vrot.lane.b32.xlu0 %v358, 88
      %v851 = vpop.permute.xlu0 %850
      %v853 = vsel %vm365, %v849, 0
      %v856 = vsel %vm365, %v851, 0
      %858 = vmatprep.subr.bf16.mxu0 0
      %859 = vmatpush1.bf16.xpose.msra.mxu0 %v856
      %860 = vmatprep.subr.bf16.mxu0 0
      %861 = vmatpush1.bf16.xpose.msra.mxu0 0
      %862 = vmatprep.subr.bf16.mxu0 0
      %863 = vmatpush1.bf16.xpose.msra.mxu0 0
      %864 = vmatprep.subr.bf16.mxu0 0
      %865 = vmatpush1.bf16.xpose.msra.mxu0 0
      %866 = vmatprep.subr.bf16.mxu0 0
      %867 = vmatpush1.bf16.xpose.msra.mxu0 0
      %868 = vmatprep.subr.bf16.mxu0 0
      %869 = vmatpush1.bf16.xpose.msra.mxu0 0
      %870 = vmatprep.subr.bf16.mxu0 0
      %871 = vmatpush1.bf16.xpose.msra.mxu0 0
      %872 = vmatprep.subr.bf16.mxu0 0
      %873 = vmatpush1.bf16.xpose.msra.mxu0 0
      %874 = vmatprep.subr.bf16.mxu0 0
      %875 = vmatpush1.bf16.xpose.msra.mxu0 0
      %876 = vmatprep.subr.bf16.mxu0 0
      %877 = vmatpush1.bf16.xpose.msra.mxu0 0
      %878 = vmatprep.subr.bf16.mxu0 0
      %879 = vmatpush1.bf16.xpose.msra.mxu0 0
      %880 = vmatprep.subr.bf16.mxu0 0
      %881 = vmatpush1.bf16.xpose.msra.mxu0 0
      %882 = vmatprep.subr.bf16.mxu0 0
      %883 = vmatpush1.bf16.xpose.msra.mxu0 0
      %884 = vmatprep.subr.bf16.mxu0 0
      %885 = vmatpush1.bf16.xpose.msra.mxu0 0
      %886 = vmatprep.subr.bf16.mxu0 0
      %887 = vmatpush1.bf16.xpose.msra.mxu0 0
      %888 = vmatprep.subr.bf16.mxu0 0
      %889 = vmatpush1.bf16.xpose.msra.mxu0 0
      %890 = vmatprep.mubr.bf16.mxu0 0
      %891 = vmatmul.mubr.bf16.gmra.mrb[0].mxu0 %v853
      %v892 = vpop.f32.mrb[0].mxu0
      %v893 = vadd.f32 0.0, %v892
      %v894 = vpop.f32.mrb[0].mxu0
      %v895 = vpop.f32.mrb[0].mxu0
      %v896 = vadd.f32 0.0, %v895
      %v897 = vpop.f32.mrb[0].mxu0
      %898 = vdwg.mxu0
      %899 = vrot.lane.b32.xlu0 %v359, 120
      %v900 = vpop.permute.xlu0 %899
      %901 = vrot.lane.b32.xlu0 %v359, 88
      %v902 = vpop.permute.xlu0 %901
      %v904 = vsel %vm365, %v900, 0
      %v907 = vsel %vm365, %v902, 0
      %909 = vmatprep.subr.bf16.mxu0 0
      %910 = vmatpush1.bf16.xpose.msra.mxu0 %v907
      %911 = vmatprep.subr.bf16.mxu0 0
      %912 = vmatpush1.bf16.xpose.msra.mxu0 0
      %913 = vmatprep.subr.bf16.mxu0 0
      %914 = vmatpush1.bf16.xpose.msra.mxu0 0
      %915 = vmatprep.subr.bf16.mxu0 0
      %916 = vmatpush1.bf16.xpose.msra.mxu0 0
      %917 = vmatprep.subr.bf16.mxu0 0
      %918 = vmatpush1.bf16.xpose.msra.mxu0 0
      %919 = vmatprep.subr.bf16.mxu0 0
      %920 = vmatpush1.bf16.xpose.msra.mxu0 0
      %921 = vmatprep.subr.bf16.mxu0 0
      %922 = vmatpush1.bf16.xpose.msra.mxu0 0
      %923 = vmatprep.subr.bf16.mxu0 0
      %924 = vmatpush1.bf16.xpose.msra.mxu0 0
      %925 = vmatprep.subr.bf16.mxu0 0
      %926 = vmatpush1.bf16.xpose.msra.mxu0 0
      %927 = vmatprep.subr.bf16.mxu0 0
      %928 = vmatpush1.bf16.xpose.msra.mxu0 0
      %929 = vmatprep.subr.bf16.mxu0 0
      %930 = vmatpush1.bf16.xpose.msra.mxu0 0
      %931 = vmatprep.subr.bf16.mxu0 0
      %932 = vmatpush1.bf16.xpose.msra.mxu0 0
      %933 = vmatprep.subr.bf16.mxu0 0
      %934 = vmatpush1.bf16.xpose.msra.mxu0 0
      %935 = vmatprep.subr.bf16.mxu0 0
      %936 = vmatpush1.bf16.xpose.msra.mxu0 0
      %937 = vmatprep.subr.bf16.mxu0 0
      %938 = vmatpush1.bf16.xpose.msra.mxu0 0
      %939 = vmatprep.subr.bf16.mxu0 0
      %940 = vmatpush1.bf16.xpose.msra.mxu0 0
      %941 = vmatprep.mubr.bf16.mxu0 0
      %942 = vmatmul.mubr.bf16.gmra.mrb[0].mxu0 %v904
      %v943 = vpop.f32.mrb[0].mxu0
      %v944 = vadd.f32 0.0, %v943
      %v945 = vpop.f32.mrb[0].mxu0
      %v946 = vpop.f32.mrb[0].mxu0
      %v947 = vadd.f32 0.0, %v946
      %v948 = vpop.f32.mrb[0].mxu0
      %949 = vdwg.mxu0
      %950 = vrot.lane.b32.xlu0 %v360, 120
      %v951 = vpop.permute.xlu0 %950
      %952 = vrot.lane.b32.xlu0 %v360, 88
      %v953 = vpop.permute.xlu0 %952
      %v955 = vsel %vm365, %v951, 0
      %v958 = vsel %vm365, %v953, 0
      %960 = vmatprep.subr.bf16.mxu0 0
      %961 = vmatpush1.bf16.xpose.msra.mxu0 %v958
      %962 = vmatprep.subr.bf16.mxu0 0
      %963 = vmatpush1.bf16.xpose.msra.mxu0 0
      %964 = vmatprep.subr.bf16.mxu0 0
      %965 = vmatpush1.bf16.xpose.msra.mxu0 0
      %966 = vmatprep.subr.bf16.mxu0 0
      %967 = vmatpush1.bf16.xpose.msra.mxu0 0
      %968 = vmatprep.subr.bf16.mxu0 0
      %969 = vmatpush1.bf16.xpose.msra.mxu0 0
      %970 = vmatprep.subr.bf16.mxu0 0
      %971 = vmatpush1.bf16.xpose.msra.mxu0 0
      %972 = vmatprep.subr.bf16.mxu0 0
      %973 = vmatpush1.bf16.xpose.msra.mxu0 0
      %974 = vmatprep.subr.bf16.mxu0 0
      %975 = vmatpush1.bf16.xpose.msra.mxu0 0
      %976 = vmatprep.subr.bf16.mxu0 0
      %977 = vmatpush1.bf16.xpose.msra.mxu0 0
      %978 = vmatprep.subr.bf16.mxu0 0
      %979 = vmatpush1.bf16.xpose.msra.mxu0 0
      %980 = vmatprep.subr.bf16.mxu0 0
      %981 = vmatpush1.bf16.xpose.msra.mxu0 0
      %982 = vmatprep.subr.bf16.mxu0 0
      %983 = vmatpush1.bf16.xpose.msra.mxu0 0
      %984 = vmatprep.subr.bf16.mxu0 0
      %985 = vmatpush1.bf16.xpose.msra.mxu0 0
      %986 = vmatprep.subr.bf16.mxu0 0
      %987 = vmatpush1.bf16.xpose.msra.mxu0 0
      %988 = vmatprep.subr.bf16.mxu0 0
      %989 = vmatpush1.bf16.xpose.msra.mxu0 0
      %990 = vmatprep.subr.bf16.mxu0 0
      %991 = vmatpush1.bf16.xpose.msra.mxu0 0
      %992 = vmatprep.mubr.bf16.mxu0 0
      %993 = vmatmul.mubr.bf16.gmra.mrb[0].mxu0 %v955
      %v994 = vpop.f32.mrb[0].mxu0
      %v995 = vadd.f32 0.0, %v994
      %v996 = vpop.f32.mrb[0].mxu0
      %v997 = vpop.f32.mrb[0].mxu0
      %v998 = vadd.f32 0.0, %v997
      %v999 = vpop.f32.mrb[0].mxu0
      %1000 = vdwg.mxu0
      %1001 = vrot.lane.b32.xlu0 %v361, 120
      %v1002 = vpop.permute.xlu0 %1001
      %1003 = vrot.lane.b32.xlu0 %v361, 88
      %v1004 = vpop.permute.xlu0 %1003
      %v1006 = vsel %vm365, %v1002, 0
      %v1009 = vsel %vm365, %v1004, 0
      %1011 = vmatprep.subr.bf16.mxu0 0
      %1012 = vmatpush1.bf16.xpose.msra.mxu0 %v1009
      %1013 = vmatprep.subr.bf16.mxu0 0
      %1014 = vmatpush1.bf16.xpose.msra.mxu0 0
      %1015 = vmatprep.subr.bf16.mxu0 0
      %1016 = vmatpush1.bf16.xpose.msra.mxu0 0
      %1017 = vmatprep.subr.bf16.mxu0 0
      %1018 = vmatpush1.bf16.xpose.msra.mxu0 0
      %1019 = vmatprep.subr.bf16.mxu0 0
      %1020 = vmatpush1.bf16.xpose.msra.mxu0 0
      %1021 = vmatprep.subr.bf16.mxu0 0
      %1022 = vmatpush1.bf16.xpose.msra.mxu0 0
      %1023 = vmatprep.subr.bf16.mxu0 0
      %1024 = vmatpush1.bf16.xpose.msra.mxu0 0
      %1025 = vmatprep.subr.bf16.mxu0 0
      %1026 = vmatpush1.bf16.xpose.msra.mxu0 0
      %1027 = vmatprep.subr.bf16.mxu0 0
      %1028 = vmatpush1.bf16.xpose.msra.mxu0 0
      %1029 = vmatprep.subr.bf16.mxu0 0
      %1030 = vmatpush1.bf16.xpose.msra.mxu0 0
      %1031 = vmatprep.subr.bf16.mxu0 0
      %1032 = vmatpush1.bf16.xpose.msra.mxu0 0
      %1033 = vmatprep.subr.bf16.mxu0 0
      %1034 = vmatpush1.bf16.xpose.msra.mxu0 0
      %1035 = vmatprep.subr.bf16.mxu0 0
      %1036 = vmatpush1.bf16.xpose.msra.mxu0 0
      %1037 = vmatprep.subr.bf16.mxu0 0
      %1038 = vmatpush1.bf16.xpose.msra.mxu0 0
      %1039 = vmatprep.subr.bf16.mxu0 0
      %1040 = vmatpush1.bf16.xpose.msra.mxu0 0
      %1041 = vmatprep.subr.bf16.mxu0 0
      %1042 = vmatpush1.bf16.xpose.msra.mxu0 0
      %1043 = vmatprep.mubr.bf16.mxu0 0
      %1044 = vmatmul.mubr.bf16.gmra.mrb[0].mxu0 %v1006
      %v1045 = vpop.f32.mrb[0].mxu0
      %v1046 = vadd.f32 0.0, %v1045
      %v1047 = vpop.f32.mrb[0].mxu0
      %v1048 = vpop.f32.mrb[0].mxu0
      %v1049 = vadd.f32 0.0, %v1048
      %v1050 = vpop.f32.mrb[0].mxu0
      %1051 = vdwg.mxu0
      %v1052 = vsel %vm563, %v893, -inf
      %1053 = vmax.xlane.f32.xlu0 %v1052
      %v1054 = vpop.xlane.xlu0 %1053
      %v1055 = vsel %vm563, %v896, -inf
      %1056 = vmax.xlane.f32.xlu0 %v1055
      %v1057 = vpop.xlane.xlu0 %1056
      %v1058 = vsel %vm563, %v944, -inf
      %1059 = vmax.xlane.f32.xlu0 %v1058
      %v1060 = vpop.xlane.xlu0 %1059
      %v1061 = vsel %vm563, %v947, -inf
      %1062 = vmax.xlane.f32.xlu0 %v1061
      %v1063 = vpop.xlane.xlu0 %1062
      %v1064 = vsel %vm563, %v995, -inf
      %1065 = vmax.xlane.f32.xlu0 %v1064
      %v1066 = vpop.xlane.xlu0 %1065
      %v1067 = vsel %vm563, %v998, -inf
      %1068 = vmax.xlane.f32.xlu0 %v1067
      %v1069 = vpop.xlane.xlu0 %1068
      %v1070 = vsel %vm563, %v1046, -inf
      %1071 = vmax.xlane.f32.xlu0 %v1070
      %v1072 = vpop.xlane.xlu0 %1071
      %v1073 = vsel %vm563, %v1049, -inf
      %1074 = vmax.xlane.f32.xlu0 %v1073
      %v1075 = vpop.xlane.xlu0 %1074
      %v1076 = vsub.f32 %v893, %v1054
      %v1077 = vsub.f32 %v896, %v1057
      %v1078 = vsub.f32 %v944, %v1060
      %v1079 = vsub.f32 %v947, %v1063
      %v1080 = vsub.f32 %v995, %v1066
      %v1081 = vsub.f32 %v998, %v1069
      %v1082 = vsub.f32 %v1046, %v1072
      %v1083 = vsub.f32 %v1049, %v1075
      %v1084 = vmul.f32 %v1076, 1.442695
      %v1085 = vpow.pop %v1084
      %v1086 = vmul.f32 %v1077, 1.442695
      %v1087 = vpow.pop %v1086
      %v1088 = vmul.f32 %v1078, 1.442695
      %v1089 = vpow.pop %v1088
      %v1090 = vmul.f32 %v1079, 1.442695
      %v1091 = vpow.pop %v1090
      %v1092 = vmul.f32 %v1080, 1.442695
      %v1093 = vpow.pop %v1092
      %v1094 = vmul.f32 %v1081, 1.442695
      %v1095 = vpow.pop %v1094
      %v1096 = vmul.f32 %v1082, 1.442695
      %v1097 = vpow.pop %v1096
      %v1098 = vmul.f32 %v1083, 1.442695
      %v1099 = vpow.pop %v1098
      %v1100 = vsel %vm563, %v1085, 0.0
      %1101 = vadd.xlane.f32.xlu0 %v1100
      %v1102 = vpop.xlane.xlu0 %1101
      %v1103 = vsel %vm563, %v1087, 0.0
      %1104 = vadd.xlane.f32.xlu0 %v1103
      %v1105 = vpop.xlane.xlu0 %1104
      %v1106 = vsel %vm563, %v1089, 0.0
      %1107 = vadd.xlane.f32.xlu0 %v1106
      %v1108 = vpop.xlane.xlu0 %1107
      %v1109 = vsel %vm563, %v1091, 0.0
      %1110 = vadd.xlane.f32.xlu0 %v1109
      %v1111 = vpop.xlane.xlu0 %1110
      %v1112 = vsel %vm563, %v1093, 0.0
      %1113 = vadd.xlane.f32.xlu0 %v1112
      %v1114 = vpop.xlane.xlu0 %1113
      %v1115 = vsel %vm563, %v1095, 0.0
      %1116 = vadd.xlane.f32.xlu0 %v1115
      %v1117 = vpop.xlane.xlu0 %1116
      %v1118 = vsel %vm563, %v1097, 0.0
      %1119 = vadd.xlane.f32.xlu0 %v1118
      %v1120 = vpop.xlane.xlu0 %1119
      %v1121 = vsel %vm563, %v1099, 0.0
      %1122 = vadd.xlane.f32.xlu0 %v1121
      %v1123 = vpop.xlane.xlu0 %1122
      %v1124 = vpack.c.bf16 %v1087, %v1085
      %v1125 = vpack.c.bf16 %v1091, %v1089
      %v1126 = vpack.c.bf16 %v1095, %v1093
      %v1127 = vpack.c.bf16 %v1099, %v1097
      %1128 = vrot.lane.b32.xlu0 %v358, 56
      %v1129 = vpop.permute.xlu0 %1128
      %v1132 = vsel %vm563, %v1124, 0
      %1134 = vmatprep.subr.bf16.mxu0 0
      %1135 = vmatpush1.bf16.msra.mxu0 %v1129
      %1136 = vmatprep.subr.bf16.mxu0 0
      %1137 = vmatpush1.bf16.msra.mxu0 0
      %1138 = vmatprep.subr.bf16.mxu0 0
      %1139 = vmatpush1.bf16.msra.mxu0 0
      %1140 = vmatprep.subr.bf16.mxu0 0
      %1141 = vmatpush1.bf16.msra.mxu0 0
      %1142 = vmatprep.subr.bf16.mxu0 0
      %1143 = vmatpush1.bf16.msra.mxu0 0
      %1144 = vmatprep.subr.bf16.mxu0 0
      %1145 = vmatpush1.bf16.msra.mxu0 0
      %1146 = vmatprep.subr.bf16.mxu0 0
      %1147 = vmatpush1.bf16.msra.mxu0 0
      %1148 = vmatprep.subr.bf16.mxu0 0
      %1149 = vmatpush1.bf16.msra.mxu0 0
      %1150 = vmatprep.subr.bf16.mxu0 0
      %1151 = vmatpush1.bf16.msra.mxu0 0
      %1152 = vmatprep.subr.bf16.mxu0 0
      %1153 = vmatpush1.bf16.msra.mxu0 0
      %1154 = vmatprep.subr.bf16.mxu0 0
      %1155 = vmatpush1.bf16.msra.mxu0 0
      %1156 = vmatprep.subr.bf16.mxu0 0
      %1157 = vmatpush1.bf16.msra.mxu0 0
      %1158 = vmatprep.subr.bf16.mxu0 0
      %1159 = vmatpush1.bf16.msra.mxu0 0
      %1160 = vmatprep.subr.bf16.mxu0 0
      %1161 = vmatpush1.bf16.msra.mxu0 0
      %1162 = vmatprep.subr.bf16.mxu0 0
      %1163 = vmatpush1.bf16.msra.mxu0 0
      %1164 = vmatprep.subr.bf16.mxu0 0
      %1165 = vmatpush1.bf16.msra.mxu0 0
      %1166 = vmatprep.mubr.bf16.mxu0 0
      %1167 = vmatmul.mubr.bf16.gmra.mrb[0].mxu0 %v1132
      %v1168 = vpop.f32.mrb[0].mxu0
      %v1169 = vadd.f32 0.0, %v1168
      %v1170 = vpop.f32.mrb[0].mxu0
      %v1171 = vpop.f32.mrb[0].mxu0
      %v1172 = vadd.f32 0.0, %v1171
      %v1173 = vpop.f32.mrb[0].mxu0
      %1174 = vdwg.mxu0
      %1175 = vrot.lane.b32.xlu0 %v359, 56
      %v1176 = vpop.permute.xlu0 %1175
      %v1179 = vsel %vm563, %v1125, 0
      %1181 = vmatprep.subr.bf16.mxu0 0
      %1182 = vmatpush1.bf16.msra.mxu0 %v1176
      %1183 = vmatprep.subr.bf16.mxu0 0
      %1184 = vmatpush1.bf16.msra.mxu0 0
      %1185 = vmatprep.subr.bf16.mxu0 0
      %1186 = vmatpush1.bf16.msra.mxu0 0
      %1187 = vmatprep.subr.bf16.mxu0 0
      %1188 = vmatpush1.bf16.msra.mxu0 0
      %1189 = vmatprep.subr.bf16.mxu0 0
      %1190 = vmatpush1.bf16.msra.mxu0 0
      %1191 = vmatprep.subr.bf16.mxu0 0
      %1192 = vmatpush1.bf16.msra.mxu0 0
      %1193 = vmatprep.subr.bf16.mxu0 0
      %1194 = vmatpush1.bf16.msra.mxu0 0
      %1195 = vmatprep.subr.bf16.mxu0 0
      %1196 = vmatpush1.bf16.msra.mxu0 0
      %1197 = vmatprep.subr.bf16.mxu0 0
      %1198 = vmatpush1.bf16.msra.mxu0 0
      %1199 = vmatprep.subr.bf16.mxu0 0
      %1200 = vmatpush1.bf16.msra.mxu0 0
      %1201 = vmatprep.subr.bf16.mxu0 0
      %1202 = vmatpush1.bf16.msra.mxu0 0
      %1203 = vmatprep.subr.bf16.mxu0 0
      %1204 = vmatpush1.bf16.msra.mxu0 0
      %1205 = vmatprep.subr.bf16.mxu0 0
      %1206 = vmatpush1.bf16.msra.mxu0 0
      %1207 = vmatprep.subr.bf16.mxu0 0
      %1208 = vmatpush1.bf16.msra.mxu0 0
      %1209 = vmatprep.subr.bf16.mxu0 0
      %1210 = vmatpush1.bf16.msra.mxu0 0
      %1211 = vmatprep.subr.bf16.mxu0 0
      %1212 = vmatpush1.bf16.msra.mxu0 0
      %1213 = vmatprep.mubr.bf16.mxu0 0
      %1214 = vmatmul.mubr.bf16.gmra.mrb[0].mxu0 %v1179
      %v1215 = vpop.f32.mrb[0].mxu0
      %v1216 = vadd.f32 0.0, %v1215
      %v1217 = vpop.f32.mrb[0].mxu0
      %v1218 = vpop.f32.mrb[0].mxu0
      %v1219 = vadd.f32 0.0, %v1218
      %v1220 = vpop.f32.mrb[0].mxu0
      %1221 = vdwg.mxu0
      %1222 = vrot.lane.b32.xlu0 %v360, 56
      %v1223 = vpop.permute.xlu0 %1222
      %v1226 = vsel %vm563, %v1126, 0
      %1228 = vmatprep.subr.bf16.mxu0 0
      %1229 = vmatpush1.bf16.msra.mxu0 %v1223
      %1230 = vmatprep.subr.bf16.mxu0 0
      %1231 = vmatpush1.bf16.msra.mxu0 0
      %1232 = vmatprep.subr.bf16.mxu0 0
      %1233 = vmatpush1.bf16.msra.mxu0 0
      %1234 = vmatprep.subr.bf16.mxu0 0
      %1235 = vmatpush1.bf16.msra.mxu0 0
      %1236 = vmatprep.subr.bf16.mxu0 0
      %1237 = vmatpush1.bf16.msra.mxu0 0
      %1238 = vmatprep.subr.bf16.mxu0 0
      %1239 = vmatpush1.bf16.msra.mxu0 0
      %1240 = vmatprep.subr.bf16.mxu0 0
      %1241 = vmatpush1.bf16.msra.mxu0 0
      %1242 = vmatprep.subr.bf16.mxu0 0
      %1243 = vmatpush1.bf16.msra.mxu0 0
      %1244 = vmatprep.subr.bf16.mxu0 0
      %1245 = vmatpush1.bf16.msra.mxu0 0
      %1246 = vmatprep.subr.bf16.mxu0 0
      %1247 = vmatpush1.bf16.msra.mxu0 0
      %1248 = vmatprep.subr.bf16.mxu0 0
      %1249 = vmatpush1.bf16.msra.mxu0 0
      %1250 = vmatprep.subr.bf16.mxu0 0
      %1251 = vmatpush1.bf16.msra.mxu0 0
      %1252 = vmatprep.subr.bf16.mxu0 0
      %1253 = vmatpush1.bf16.msra.mxu0 0
      %1254 = vmatprep.subr.bf16.mxu0 0
      %1255 = vmatpush1.bf16.msra.mxu0 0
      %1256 = vmatprep.subr.bf16.mxu0 0
      %1257 = vmatpush1.bf16.msra.mxu0 0
      %1258 = vmatprep.subr.bf16.mxu0 0
      %1259 = vmatpush1.bf16.msra.mxu0 0
      %1260 = vmatprep.mubr.bf16.mxu0 0
      %1261 = vmatmul.mubr.bf16.gmra.mrb[0].mxu0 %v1226
      %v1262 = vpop.f32.mrb[0].mxu0
      %v1263 = vadd.f32 0.0, %v1262
      %v1264 = vpop.f32.mrb[0].mxu0
      %v1265 = vpop.f32.mrb[0].mxu0
      %v1266 = vadd.f32 0.0, %v1265
      %v1267 = vpop.f32.mrb[0].mxu0
      %1268 = vdwg.mxu0
      %1269 = vrot.lane.b32.xlu0 %v361, 56
      %v1270 = vpop.permute.xlu0 %1269
      %v1273 = vsel %vm563, %v1127, 0
      %1275 = vmatprep.subr.bf16.mxu0 0
      %1276 = vmatpush1.bf16.msra.mxu0 %v1270
      %1277 = vmatprep.subr.bf16.mxu0 0
      %1278 = vmatpush1.bf16.msra.mxu0 0
      %1279 = vmatprep.subr.bf16.mxu0 0
      %1280 = vmatpush1.bf16.msra.mxu0 0
      %1281 = vmatprep.subr.bf16.mxu0 0
      %1282 = vmatpush1.bf16.msra.mxu0 0
      %1283 = vmatprep.subr.bf16.mxu0 0
      %1284 = vmatpush1.bf16.msra.mxu0 0
      %1285 = vmatprep.subr.bf16.mxu0 0
      %1286 = vmatpush1.bf16.msra.mxu0 0
      %1287 = vmatprep.subr.bf16.mxu0 0
      %1288 = vmatpush1.bf16.msra.mxu0 0
      %1289 = vmatprep.subr.bf16.mxu0 0
      %1290 = vmatpush1.bf16.msra.mxu0 0
      %1291 = vmatprep.subr.bf16.mxu0 0
      %1292 = vmatpush1.bf16.msra.mxu0 0
      %1293 = vmatprep.subr.bf16.mxu0 0
      %1294 = vmatpush1.bf16.msra.mxu0 0
      %1295 = vmatprep.subr.bf16.mxu0 0
      %1296 = vmatpush1.bf16.msra.mxu0 0
      %1297 = vmatprep.subr.bf16.mxu0 0
      %1298 = vmatpush1.bf16.msra.mxu0 0
      %1299 = vmatprep.subr.bf16.mxu0 0
      %1300 = vmatpush1.bf16.msra.mxu0 0
      %1301 = vmatprep.subr.bf16.mxu0 0
      %1302 = vmatpush1.bf16.msra.mxu0 0
      %1303 = vmatprep.subr.bf16.mxu0 0
      %1304 = vmatpush1.bf16.msra.mxu0 0
      %1305 = vmatprep.subr.bf16.mxu0 0
      %1306 = vmatpush1.bf16.msra.mxu0 0
      %1307 = vmatprep.mubr.bf16.mxu0 0
      %1308 = vmatmul.mubr.bf16.gmra.mrb[0].mxu0 %v1273
      %v1309 = vpop.f32.mrb[0].mxu0
      %v1310 = vadd.f32 0.0, %v1309
      %v1311 = vpop.f32.mrb[0].mxu0
      %v1312 = vpop.f32.mrb[0].mxu0
      %v1313 = vadd.f32 0.0, %v1312
      %v1314 = vpop.f32.mrb[0].mxu0
      %1315 = vdwg.mxu0
      %v1316 = vrcp.pop %v1102
      %v1317 = vrcp.pop %v1105
      %v1318 = vrcp.pop %v1108
      %v1319 = vrcp.pop %v1111
      %v1320 = vrcp.pop %v1114
      %v1321 = vrcp.pop %v1117
      %v1322 = vrcp.pop %v1120
      %v1323 = vrcp.pop %v1123
      %v1324 = vmul.f32 %v1169, %v1316
      %v1325 = vmul.f32 %v1172, %v1317
      %v1326 = vmul.f32 %v1216, %v1318
      %v1327 = vmul.f32 %v1219, %v1319
      %v1328 = vmul.f32 %v1263, %v1320
      %v1329 = vmul.f32 %v1266, %v1321
      %v1330 = vmul.f32 %v1310, %v1322
      %v1331 = vmul.f32 %v1313, %v1323
      %v1332 = vpack.c.bf16 %v1325, %v1324
      %v1333 = vpack.c.bf16 %v1327, %v1326
      %v1334 = vpack.c.bf16 %v1329, %v1328
      %v1335 = vpack.c.bf16 %v1331, %v1330
      %1336 = vrot.lane.b32.xlu0 %v358, 112
      %v1337 = vpop.permute.xlu0 %1336
      %1338 = vrot.lane.b32.xlu0 %v358, 80
      %v1339 = vpop.permute.xlu0 %1338
      %v1341 = vsel %vm365, %v1337, 0
      %v1344 = vsel %vm365, %v1339, 0
      %1346 = vmatprep.subr.bf16.mxu0 0
      %1347 = vmatpush1.bf16.xpose.msra.mxu0 %v1344
      %1348 = vmatprep.subr.bf16.mxu0 0
      %1349 = vmatpush1.bf16.xpose.msra.mxu0 0
      %1350 = vmatprep.subr.bf16.mxu0 0
      %1351 = vmatpush1.bf16.xpose.msra.mxu0 0
      %1352 = vmatprep.subr.bf16.mxu0 0
      %1353 = vmatpush1.bf16.xpose.msra.mxu0 0
      %1354 = vmatprep.subr.bf16.mxu0 0
      %1355 = vmatpush1.bf16.xpose.msra.mxu0 0
      %1356 = vmatprep.subr.bf16.mxu0 0
      %1357 = vmatpush1.bf16.xpose.msra.mxu0 0
      %1358 = vmatprep.subr.bf16.mxu0 0
      %1359 = vmatpush1.bf16.xpose.msra.mxu0 0
      %1360 = vmatprep.subr.bf16.mxu0 0
      %1361 = vmatpush1.bf16.xpose.msra.mxu0 0
      %1362 = vmatprep.subr.bf16.mxu0 0
      %1363 = vmatpush1.bf16.xpose.msra.mxu0 0
      %1364 = vmatprep.subr.bf16.mxu0 0
      %1365 = vmatpush1.bf16.xpose.msra.mxu0 0
      %1366 = vmatprep.subr.bf16.mxu0 0
      %1367 = vmatpush1.bf16.xpose.msra.mxu0 0
      %1368 = vmatprep.subr.bf16.mxu0 0
      %1369 = vmatpush1.bf16.xpose.msra.mxu0 0
      %1370 = vmatprep.subr.bf16.mxu0 0
      %1371 = vmatpush1.bf16.xpose.msra.mxu0 0
      %1372 = vmatprep.subr.bf16.mxu0 0
      %1373 = vmatpush1.bf16.xpose.msra.mxu0 0
      %1374 = vmatprep.subr.bf16.mxu0 0
      %1375 = vmatpush1.bf16.xpose.msra.mxu0 0
      %1376 = vmatprep.subr.bf16.mxu0 0
      %1377 = vmatpush1.bf16.xpose.msra.mxu0 0
      %1378 = vmatprep.mubr.bf16.mxu0 0
      %1379 = vmatmul.mubr.bf16.gmra.mrb[0].mxu0 %v1341
      %v1380 = vpop.f32.mrb[0].mxu0
      %v1381 = vadd.f32 0.0, %v1380
      %v1382 = vpop.f32.mrb[0].mxu0
      %v1383 = vpop.f32.mrb[0].mxu0
      %v1384 = vadd.f32 0.0, %v1383
      %v1385 = vpop.f32.mrb[0].mxu0
      %1386 = vdwg.mxu0
      %1387 = vrot.lane.b32.xlu0 %v359, 112
      %v1388 = vpop.permute.xlu0 %1387
      %1389 = vrot.lane.b32.xlu0 %v359, 80
      %v1390 = vpop.permute.xlu0 %1389
      %v1392 = vsel %vm365, %v1388, 0
      %v1395 = vsel %vm365, %v1390, 0
      %1397 = vmatprep.subr.bf16.mxu0 0
      %1398 = vmatpush1.bf16.xpose.msra.mxu0 %v1395
      %1399 = vmatprep.subr.bf16.mxu0 0
      %1400 = vmatpush1.bf16.xpose.msra.mxu0 0
      %1401 = vmatprep.subr.bf16.mxu0 0
      %1402 = vmatpush1.bf16.xpose.msra.mxu0 0
      %1403 = vmatprep.subr.bf16.mxu0 0
      %1404 = vmatpush1.bf16.xpose.msra.mxu0 0
      %1405 = vmatprep.subr.bf16.mxu0 0
      %1406 = vmatpush1.bf16.xpose.msra.mxu0 0
      %1407 = vmatprep.subr.bf16.mxu0 0
      %1408 = vmatpush1.bf16.xpose.msra.mxu0 0
      %1409 = vmatprep.subr.bf16.mxu0 0
      %1410 = vmatpush1.bf16.xpose.msra.mxu0 0
      %1411 = vmatprep.subr.bf16.mxu0 0
      %1412 = vmatpush1.bf16.xpose.msra.mxu0 0
      %1413 = vmatprep.subr.bf16.mxu0 0
      %1414 = vmatpush1.bf16.xpose.msra.mxu0 0
      %1415 = vmatprep.subr.bf16.mxu0 0
      %1416 = vmatpush1.bf16.xpose.msra.mxu0 0
      %1417 = vmatprep.subr.bf16.mxu0 0
      %1418 = vmatpush1.bf16.xpose.msra.mxu0 0
      %1419 = vmatprep.subr.bf16.mxu0 0
      %1420 = vmatpush1.bf16.xpose.msra.mxu0 0
      %1421 = vmatprep.subr.bf16.mxu0 0
      %1422 = vmatpush1.bf16.xpose.msra.mxu0 0
      %1423 = vmatprep.subr.bf16.mxu0 0
      %1424 = vmatpush1.bf16.xpose.msra.mxu0 0
      %1425 = vmatprep.subr.bf16.mxu0 0
      %1426 = vmatpush1.bf16.xpose.msra.mxu0 0
      %1427 = vmatprep.subr.bf16.mxu0 0
      %1428 = vmatpush1.bf16.xpose.msra.mxu0 0
      %1429 = vmatprep.mubr.bf16.mxu0 0
      %1430 = vmatmul.mubr.bf16.gmra.mrb[0].mxu0 %v1392
      %v1431 = vpop.f32.mrb[0].mxu0
      %v1432 = vadd.f32 0.0, %v1431
      %v1433 = vpop.f32.mrb[0].mxu0
      %v1434 = vpop.f32.mrb[0].mxu0
      %v1435 = vadd.f32 0.0, %v1434
      %v1436 = vpop.f32.mrb[0].mxu0
      %1437 = vdwg.mxu0
      %1438 = vrot.lane.b32.xlu0 %v360, 112
      %v1439 = vpop.permute.xlu0 %1438
      %1440 = vrot.lane.b32.xlu0 %v360, 80
      %v1441 = vpop.permute.xlu0 %1440
      %v1443 = vsel %vm365, %v1439, 0
      %v1446 = vsel %vm365, %v1441, 0
      %1448 = vmatprep.subr.bf16.mxu0 0
      %1449 = vmatpush1.bf16.xpose.msra.mxu0 %v1446
      %1450 = vmatprep.subr.bf16.mxu0 0
      %1451 = vmatpush1.bf16.xpose.msra.mxu0 0
      %1452 = vmatprep.subr.bf16.mxu0 0
      %1453 = vmatpush1.bf16.xpose.msra.mxu0 0
      %1454 = vmatprep.subr.bf16.mxu0 0
      %1455 = vmatpush1.bf16.xpose.msra.mxu0 0
      %1456 = vmatprep.subr.bf16.mxu0 0
      %1457 = vmatpush1.bf16.xpose.msra.mxu0 0
      %1458 = vmatprep.subr.bf16.mxu0 0
      %1459 = vmatpush1.bf16.xpose.msra.mxu0 0
      %1460 = vmatprep.subr.bf16.mxu0 0
      %1461 = vmatpush1.bf16.xpose.msra.mxu0 0
      %1462 = vmatprep.subr.bf16.mxu0 0
      %1463 = vmatpush1.bf16.xpose.msra.mxu0 0
      %1464 = vmatprep.subr.bf16.mxu0 0
      %1465 = vmatpush1.bf16.xpose.msra.mxu0 0
      %1466 = vmatprep.subr.bf16.mxu0 0
      %1467 = vmatpush1.bf16.xpose.msra.mxu0 0
      %1468 = vmatprep.subr.bf16.mxu0 0
      %1469 = vmatpush1.bf16.xpose.msra.mxu0 0
      %1470 = vmatprep.subr.bf16.mxu0 0
      %1471 = vmatpush1.bf16.xpose.msra.mxu0 0
      %1472 = vmatprep.subr.bf16.mxu0 0
      %1473 = vmatpush1.bf16.xpose.msra.mxu0 0
      %1474 = vmatprep.subr.bf16.mxu0 0
      %1475 = vmatpush1.bf16.xpose.msra.mxu0 0
      %1476 = vmatprep.subr.bf16.mxu0 0
      %1477 = vmatpush1.bf16.xpose.msra.mxu0 0
      %1478 = vmatprep.subr.bf16.mxu0 0
      %1479 = vmatpush1.bf16.xpose.msra.mxu0 0
      %1480 = vmatprep.mubr.bf16.mxu0 0
      %1481 = vmatmul.mubr.bf16.gmra.mrb[0].mxu0 %v1443
      %v1482 = vpop.f32.mrb[0].mxu0
      %v1483 = vadd.f32 0.0, %v1482
      %v1484 = vpop.f32.mrb[0].mxu0
      %v1485 = vpop.f32.mrb[0].mxu0
      %v1486 = vadd.f32 0.0, %v1485
      %v1487 = vpop.f32.mrb[0].mxu0
      %1488 = vdwg.mxu0
      %1489 = vrot.lane.b32.xlu0 %v361, 112
      %v1490 = vpop.permute.xlu0 %1489
      %1491 = vrot.lane.b32.xlu0 %v361, 80
      %v1492 = vpop.permute.xlu0 %1491
      %v1494 = vsel %vm365, %v1490, 0
      %v1497 = vsel %vm365, %v1492, 0
      %1499 = vmatprep.subr.bf16.mxu0 0
      %1500 = vmatpush1.bf16.xpose.msra.mxu0 %v1497
      %1501 = vmatprep.subr.bf16.mxu0 0
      %1502 = vmatpush1.bf16.xpose.msra.mxu0 0
      %1503 = vmatprep.subr.bf16.mxu0 0
      %1504 = vmatpush1.bf16.xpose.msra.mxu0 0
      %1505 = vmatprep.subr.bf16.mxu0 0
      %1506 = vmatpush1.bf16.xpose.msra.mxu0 0
      %1507 = vmatprep.subr.bf16.mxu0 0
      %1508 = vmatpush1.bf16.xpose.msra.mxu0 0
      %1509 = vmatprep.subr.bf16.mxu0 0
      %1510 = vmatpush1.bf16.xpose.msra.mxu0 0
      %1511 = vmatprep.subr.bf16.mxu0 0
      %1512 = vmatpush1.bf16.xpose.msra.mxu0 0
      %1513 = vmatprep.subr.bf16.mxu0 0
      %1514 = vmatpush1.bf16.xpose.msra.mxu0 0
      %1515 = vmatprep.subr.bf16.mxu0 0
      %1516 = vmatpush1.bf16.xpose.msra.mxu0 0
      %1517 = vmatprep.subr.bf16.mxu0 0
      %1518 = vmatpush1.bf16.xpose.msra.mxu0 0
      %1519 = vmatprep.subr.bf16.mxu0 0
      %1520 = vmatpush1.bf16.xpose.msra.mxu0 0
      %1521 = vmatprep.subr.bf16.mxu0 0
      %1522 = vmatpush1.bf16.xpose.msra.mxu0 0
      %1523 = vmatprep.subr.bf16.mxu0 0
      %1524 = vmatpush1.bf16.xpose.msra.mxu0 0
      %1525 = vmatprep.subr.bf16.mxu0 0
      %1526 = vmatpush1.bf16.xpose.msra.mxu0 0
      %1527 = vmatprep.subr.bf16.mxu0 0
      %1528 = vmatpush1.bf16.xpose.msra.mxu0 0
      %1529 = vmatprep.subr.bf16.mxu0 0
      %1530 = vmatpush1.bf16.xpose.msra.mxu0 0
      %1531 = vmatprep.mubr.bf16.mxu0 0
      %1532 = vmatmul.mubr.bf16.gmra.mrb[0].mxu0 %v1494
      %v1533 = vpop.f32.mrb[0].mxu0
      %v1534 = vadd.f32 0.0, %v1533
      %v1535 = vpop.f32.mrb[0].mxu0
      %v1536 = vpop.f32.mrb[0].mxu0
      %v1537 = vadd.f32 0.0, %v1536
      %v1538 = vpop.f32.mrb[0].mxu0
      %1539 = vdwg.mxu0
      %v1540 = vsel %vm563, %v1381, -inf
      %1541 = vmax.xlane.f32.xlu0 %v1540
      %v1542 = vpop.xlane.xlu0 %1541
      %v1543 = vsel %vm563, %v1384, -inf
      %1544 = vmax.xlane.f32.xlu0 %v1543
      %v1545 = vpop.xlane.xlu0 %1544
      %v1546 = vsel %vm563, %v1432, -inf
      %1547 = vmax.xlane.f32.xlu0 %v1546
      %v1548 = vpop.xlane.xlu0 %1547
      %v1549 = vsel %vm563, %v1435, -inf
      %1550 = vmax.xlane.f32.xlu0 %v1549
      %v1551 = vpop.xlane.xlu0 %1550
      %v1552 = vsel %vm563, %v1483, -inf
      %1553 = vmax.xlane.f32.xlu0 %v1552
      %v1554 = vpop.xlane.xlu0 %1553
      %v1555 = vsel %vm563, %v1486, -inf
      %1556 = vmax.xlane.f32.xlu0 %v1555
      %v1557 = vpop.xlane.xlu0 %1556
      %v1558 = vsel %vm563, %v1534, -inf
      %1559 = vmax.xlane.f32.xlu0 %v1558
      %v1560 = vpop.xlane.xlu0 %1559
      %v1561 = vsel %vm563, %v1537, -inf
      %1562 = vmax.xlane.f32.xlu0 %v1561
      %v1563 = vpop.xlane.xlu0 %1562
      %v1564 = vsub.f32 %v1381, %v1542
      %v1565 = vsub.f32 %v1384, %v1545
      %v1566 = vsub.f32 %v1432, %v1548
      %v1567 = vsub.f32 %v1435, %v1551
      %v1568 = vsub.f32 %v1483, %v1554
      %v1569 = vsub.f32 %v1486, %v1557
      %v1570 = vsub.f32 %v1534, %v1560
      %v1571 = vsub.f32 %v1537, %v1563
      %v1572 = vmul.f32 %v1564, 1.442695
      %v1573 = vpow.pop %v1572
      %v1574 = vmul.f32 %v1565, 1.442695
      %v1575 = vpow.pop %v1574
      %v1576 = vmul.f32 %v1566, 1.442695
      %v1577 = vpow.pop %v1576
      %v1578 = vmul.f32 %v1567, 1.442695
      %v1579 = vpow.pop %v1578
      %v1580 = vmul.f32 %v1568, 1.442695
      %v1581 = vpow.pop %v1580
      %v1582 = vmul.f32 %v1569, 1.442695
      %v1583 = vpow.pop %v1582
      %v1584 = vmul.f32 %v1570, 1.442695
      %v1585 = vpow.pop %v1584
      %v1586 = vmul.f32 %v1571, 1.442695
      %v1587 = vpow.pop %v1586
      %v1588 = vsel %vm563, %v1573, 0.0
      %1589 = vadd.xlane.f32.xlu0 %v1588
      %v1590 = vpop.xlane.xlu0 %1589
      %v1591 = vsel %vm563, %v1575, 0.0
      %1592 = vadd.xlane.f32.xlu0 %v1591
      %v1593 = vpop.xlane.xlu0 %1592
      %v1594 = vsel %vm563, %v1577, 0.0
      %1595 = vadd.xlane.f32.xlu0 %v1594
      %v1596 = vpop.xlane.xlu0 %1595
      %v1597 = vsel %vm563, %v1579, 0.0
      %1598 = vadd.xlane.f32.xlu0 %v1597
      %v1599 = vpop.xlane.xlu0 %1598
      %v1600 = vsel %vm563, %v1581, 0.0
      %1601 = vadd.xlane.f32.xlu0 %v1600
      %v1602 = vpop.xlane.xlu0 %1601
      %v1603 = vsel %vm563, %v1583, 0.0
      %1604 = vadd.xlane.f32.xlu0 %v1603
      %v1605 = vpop.xlane.xlu0 %1604
      %v1606 = vsel %vm563, %v1585, 0.0
      %1607 = vadd.xlane.f32.xlu0 %v1606
      %v1608 = vpop.xlane.xlu0 %1607
      %v1609 = vsel %vm563, %v1587, 0.0
      %1610 = vadd.xlane.f32.xlu0 %v1609
      %v1611 = vpop.xlane.xlu0 %1610
      %v1612 = vpack.c.bf16 %v1575, %v1573
      %v1613 = vpack.c.bf16 %v1579, %v1577
      %v1614 = vpack.c.bf16 %v1583, %v1581
      %v1615 = vpack.c.bf16 %v1587, %v1585
      %1616 = vrot.lane.b32.xlu0 %v358, 48
      %v1617 = vpop.permute.xlu0 %1616
      %v1620 = vsel %vm563, %v1612, 0
      %1622 = vmatprep.subr.bf16.mxu0 0
      %1623 = vmatpush1.bf16.msra.mxu0 %v1617
      %1624 = vmatprep.subr.bf16.mxu0 0
      %1625 = vmatpush1.bf16.msra.mxu0 0
      %1626 = vmatprep.subr.bf16.mxu0 0
      %1627 = vmatpush1.bf16.msra.mxu0 0
      %1628 = vmatprep.subr.bf16.mxu0 0
      %1629 = vmatpush1.bf16.msra.mxu0 0
      %1630 = vmatprep.subr.bf16.mxu0 0
      %1631 = vmatpush1.bf16.msra.mxu0 0
      %1632 = vmatprep.subr.bf16.mxu0 0
      %1633 = vmatpush1.bf16.msra.mxu0 0
      %1634 = vmatprep.subr.bf16.mxu0 0
      %1635 = vmatpush1.bf16.msra.mxu0 0
      %1636 = vmatprep.subr.bf16.mxu0 0
      %1637 = vmatpush1.bf16.msra.mxu0 0
      %1638 = vmatprep.subr.bf16.mxu0 0
      %1639 = vmatpush1.bf16.msra.mxu0 0
      %1640 = vmatprep.subr.bf16.mxu0 0
      %1641 = vmatpush1.bf16.msra.mxu0 0
      %1642 = vmatprep.subr.bf16.mxu0 0
      %1643 = vmatpush1.bf16.msra.mxu0 0
      %1644 = vmatprep.subr.bf16.mxu0 0
      %1645 = vmatpush1.bf16.msra.mxu0 0
      %1646 = vmatprep.subr.bf16.mxu0 0
      %1647 = vmatpush1.bf16.msra.mxu0 0
      %1648 = vmatprep.subr.bf16.mxu0 0
      %1649 = vmatpush1.bf16.msra.mxu0 0
      %1650 = vmatprep.subr.bf16.mxu0 0
      %1651 = vmatpush1.bf16.msra.mxu0 0
      %1652 = vmatprep.subr.bf16.mxu0 0
      %1653 = vmatpush1.bf16.msra.mxu0 0
      %1654 = vmatprep.mubr.bf16.mxu0 0
      %1655 = vmatmul.mubr.bf16.gmra.mrb[0].mxu0 %v1620
      %v1656 = vpop.f32.mrb[0].mxu0
      %v1657 = vadd.f32 0.0, %v1656
      %v1658 = vpop.f32.mrb[0].mxu0
      %v1659 = vpop.f32.mrb[0].mxu0
      %v1660 = vadd.f32 0.0, %v1659
      %v1661 = vpop.f32.mrb[0].mxu0
      %1662 = vdwg.mxu0
      %1663 = vrot.lane.b32.xlu0 %v359, 48
      %v1664 = vpop.permute.xlu0 %1663
      %v1667 = vsel %vm563, %v1613, 0
      %1669 = vmatprep.subr.bf16.mxu0 0
      %1670 = vmatpush1.bf16.msra.mxu0 %v1664
      %1671 = vmatprep.subr.bf16.mxu0 0
      %1672 = vmatpush1.bf16.msra.mxu0 0
      %1673 = vmatprep.subr.bf16.mxu0 0
      %1674 = vmatpush1.bf16.msra.mxu0 0
      %1675 = vmatprep.subr.bf16.mxu0 0
      %1676 = vmatpush1.bf16.msra.mxu0 0
      %1677 = vmatprep.subr.bf16.mxu0 0
      %1678 = vmatpush1.bf16.msra.mxu0 0
      %1679 = vmatprep.subr.bf16.mxu0 0
      %1680 = vmatpush1.bf16.msra.mxu0 0
      %1681 = vmatprep.subr.bf16.mxu0 0
      %1682 = vmatpush1.bf16.msra.mxu0 0
      %1683 = vmatprep.subr.bf16.mxu0 0
      %1684 = vmatpush1.bf16.msra.mxu0 0
      %1685 = vmatprep.subr.bf16.mxu0 0
      %1686 = vmatpush1.bf16.msra.mxu0 0
      %1687 = vmatprep.subr.bf16.mxu0 0
      %1688 = vmatpush1.bf16.msra.mxu0 0
      %1689 = vmatprep.subr.bf16.mxu0 0
      %1690 = vmatpush1.bf16.msra.mxu0 0
      %1691 = vmatprep.subr.bf16.mxu0 0
      %1692 = vmatpush1.bf16.msra.mxu0 0
      %1693 = vmatprep.subr.bf16.mxu0 0
      %1694 = vmatpush1.bf16.msra.mxu0 0
      %1695 = vmatprep.subr.bf16.mxu0 0
      %1696 = vmatpush1.bf16.msra.mxu0 0
      %1697 = vmatprep.subr.bf16.mxu0 0
      %1698 = vmatpush1.bf16.msra.mxu0 0
      %1699 = vmatprep.subr.bf16.mxu0 0
      %1700 = vmatpush1.bf16.msra.mxu0 0
      %1701 = vmatprep.mubr.bf16.mxu0 0
      %1702 = vmatmul.mubr.bf16.gmra.mrb[0].mxu0 %v1667
      %v1703 = vpop.f32.mrb[0].mxu0
      %v1704 = vadd.f32 0.0, %v1703
      %v1705 = vpop.f32.mrb[0].mxu0
      %v1706 = vpop.f32.mrb[0].mxu0
      %v1707 = vadd.f32 0.0, %v1706
      %v1708 = vpop.f32.mrb[0].mxu0
      %1709 = vdwg.mxu0
      %1710 = vrot.lane.b32.xlu0 %v360, 48
      %v1711 = vpop.permute.xlu0 %1710
      %v1714 = vsel %vm563, %v1614, 0
      %1716 = vmatprep.subr.bf16.mxu0 0
      %1717 = vmatpush1.bf16.msra.mxu0 %v1711
      %1718 = vmatprep.subr.bf16.mxu0 0
      %1719 = vmatpush1.bf16.msra.mxu0 0
      %1720 = vmatprep.subr.bf16.mxu0 0
      %1721 = vmatpush1.bf16.msra.mxu0 0
      %1722 = vmatprep.subr.bf16.mxu0 0
      %1723 = vmatpush1.bf16.msra.mxu0 0
      %1724 = vmatprep.subr.bf16.mxu0 0
      %1725 = vmatpush1.bf16.msra.mxu0 0
      %1726 = vmatprep.subr.bf16.mxu0 0
      %1727 = vmatpush1.bf16.msra.mxu0 0
      %1728 = vmatprep.subr.bf16.mxu0 0
      %1729 = vmatpush1.bf16.msra.mxu0 0
      %1730 = vmatprep.subr.bf16.mxu0 0
      %1731 = vmatpush1.bf16.msra.mxu0 0
      %1732 = vmatprep.subr.bf16.mxu0 0
      %1733 = vmatpush1.bf16.msra.mxu0 0
      %1734 = vmatprep.subr.bf16.mxu0 0
      %1735 = vmatpush1.bf16.msra.mxu0 0
      %1736 = vmatprep.subr.bf16.mxu0 0
      %1737 = vmatpush1.bf16.msra.mxu0 0
      %1738 = vmatprep.subr.bf16.mxu0 0
      %1739 = vmatpush1.bf16.msra.mxu0 0
      %1740 = vmatprep.subr.bf16.mxu0 0
      %1741 = vmatpush1.bf16.msra.mxu0 0
      %1742 = vmatprep.subr.bf16.mxu0 0
      %1743 = vmatpush1.bf16.msra.mxu0 0
      %1744 = vmatprep.subr.bf16.mxu0 0
      %1745 = vmatpush1.bf16.msra.mxu0 0
      %1746 = vmatprep.subr.bf16.mxu0 0
      %1747 = vmatpush1.bf16.msra.mxu0 0
      %1748 = vmatprep.mubr.bf16.mxu0 0
      %1749 = vmatmul.mubr.bf16.gmra.mrb[0].mxu0 %v1714
      %v1750 = vpop.f32.mrb[0].mxu0
      %v1751 = vadd.f32 0.0, %v1750
      %v1752 = vpop.f32.mrb[0].mxu0
      %v1753 = vpop.f32.mrb[0].mxu0
      %v1754 = vadd.f32 0.0, %v1753
      %v1755 = vpop.f32.mrb[0].mxu0
      %1756 = vdwg.mxu0
      %1757 = vrot.lane.b32.xlu0 %v361, 48
      %v1758 = vpop.permute.xlu0 %1757
      %v1761 = vsel %vm563, %v1615, 0
      %1763 = vmatprep.subr.bf16.mxu0 0
      %1764 = vmatpush1.bf16.msra.mxu0 %v1758
      %1765 = vmatprep.subr.bf16.mxu0 0
      %1766 = vmatpush1.bf16.msra.mxu0 0
      %1767 = vmatprep.subr.bf16.mxu0 0
      %1768 = vmatpush1.bf16.msra.mxu0 0
      %1769 = vmatprep.subr.bf16.mxu0 0
      %1770 = vmatpush1.bf16.msra.mxu0 0
      %1771 = vmatprep.subr.bf16.mxu0 0
      %1772 = vmatpush1.bf16.msra.mxu0 0
      %1773 = vmatprep.subr.bf16.mxu0 0
      %1774 = vmatpush1.bf16.msra.mxu0 0
      %1775 = vmatprep.subr.bf16.mxu0 0
      %1776 = vmatpush1.bf16.msra.mxu0 0
      %1777 = vmatprep.subr.bf16.mxu0 0
      %1778 = vmatpush1.bf16.msra.mxu0 0
      %1779 = vmatprep.subr.bf16.mxu0 0
      %1780 = vmatpush1.bf16.msra.mxu0 0
      %1781 = vmatprep.subr.bf16.mxu0 0
      %1782 = vmatpush1.bf16.msra.mxu0 0
      %1783 = vmatprep.subr.bf16.mxu0 0
      %1784 = vmatpush1.bf16.msra.mxu0 0
      %1785 = vmatprep.subr.bf16.mxu0 0
      %1786 = vmatpush1.bf16.msra.mxu0 0
      %1787 = vmatprep.subr.bf16.mxu0 0
      %1788 = vmatpush1.bf16.msra.mxu0 0
      %1789 = vmatprep.subr.bf16.mxu0 0
      %1790 = vmatpush1.bf16.msra.mxu0 0
      %1791 = vmatprep.subr.bf16.mxu0 0
      %1792 = vmatpush1.bf16.msra.mxu0 0
      %1793 = vmatprep.subr.bf16.mxu0 0
      %1794 = vmatpush1.bf16.msra.mxu0 0
      %1795 = vmatprep.mubr.bf16.mxu0 0
      %1796 = vmatmul.mubr.bf16.gmra.mrb[0].mxu0 %v1761
      %v1797 = vpop.f32.mrb[0].mxu0
      %v1798 = vadd.f32 0.0, %v1797
      %v1799 = vpop.f32.mrb[0].mxu0
      %v1800 = vpop.f32.mrb[0].mxu0
      %v1801 = vadd.f32 0.0, %v1800
      %v1802 = vpop.f32.mrb[0].mxu0
      %1803 = vdwg.mxu0
      %v1804 = vrcp.pop %v1590
      %v1805 = vrcp.pop %v1593
      %v1806 = vrcp.pop %v1596
      %v1807 = vrcp.pop %v1599
      %v1808 = vrcp.pop %v1602
      %v1809 = vrcp.pop %v1605
      %v1810 = vrcp.pop %v1608
      %v1811 = vrcp.pop %v1611
      %v1812 = vmul.f32 %v1657, %v1804
      %v1813 = vmul.f32 %v1660, %v1805
      %v1814 = vmul.f32 %v1704, %v1806
      %v1815 = vmul.f32 %v1707, %v1807
      %v1816 = vmul.f32 %v1751, %v1808
      %v1817 = vmul.f32 %v1754, %v1809
      %v1818 = vmul.f32 %v1798, %v1810
      %v1819 = vmul.f32 %v1801, %v1811
      %v1820 = vpack.c.bf16 %v1813, %v1812
      %v1821 = vpack.c.bf16 %v1815, %v1814
      %v1822 = vpack.c.bf16 %v1817, %v1816
      %v1823 = vpack.c.bf16 %v1819, %v1818
      %1824 = vrot.lane.b32.xlu0 %v358, 104
      %v1825 = vpop.permute.xlu0 %1824
      %1826 = vrot.lane.b32.xlu0 %v358, 72
      %v1827 = vpop.permute.xlu0 %1826
      %v1829 = vsel %vm365, %v1825, 0
      %v1832 = vsel %vm365, %v1827, 0
      %1834 = vmatprep.subr.bf16.mxu0 0
      %1835 = vmatpush1.bf16.xpose.msra.mxu0 %v1832
      %1836 = vmatprep.subr.bf16.mxu0 0
      %1837 = vmatpush1.bf16.xpose.msra.mxu0 0
      %1838 = vmatprep.subr.bf16.mxu0 0
      %1839 = vmatpush1.bf16.xpose.msra.mxu0 0
      %1840 = vmatprep.subr.bf16.mxu0 0
      %1841 = vmatpush1.bf16.xpose.msra.mxu0 0
      %1842 = vmatprep.subr.bf16.mxu0 0
      %1843 = vmatpush1.bf16.xpose.msra.mxu0 0
      %1844 = vmatprep.subr.bf16.mxu0 0
      %1845 = vmatpush1.bf16.xpose.msra.mxu0 0
      %1846 = vmatprep.subr.bf16.mxu0 0
      %1847 = vmatpush1.bf16.xpose.msra.mxu0 0
      %1848 = vmatprep.subr.bf16.mxu0 0
      %1849 = vmatpush1.bf16.xpose.msra.mxu0 0
      %1850 = vmatprep.subr.bf16.mxu0 0
      %1851 = vmatpush1.bf16.xpose.msra.mxu0 0
      %1852 = vmatprep.subr.bf16.mxu0 0
      %1853 = vmatpush1.bf16.xpose.msra.mxu0 0
      %1854 = vmatprep.subr.bf16.mxu0 0
      %1855 = vmatpush1.bf16.xpose.msra.mxu0 0
      %1856 = vmatprep.subr.bf16.mxu0 0
      %1857 = vmatpush1.bf16.xpose.msra.mxu0 0
      %1858 = vmatprep.subr.bf16.mxu0 0
      %1859 = vmatpush1.bf16.xpose.msra.mxu0 0
      %1860 = vmatprep.subr.bf16.mxu0 0
      %1861 = vmatpush1.bf16.xpose.msra.mxu0 0
      %1862 = vmatprep.subr.bf16.mxu0 0
      %1863 = vmatpush1.bf16.xpose.msra.mxu0 0
      %1864 = vmatprep.subr.bf16.mxu0 0
      %1865 = vmatpush1.bf16.xpose.msra.mxu0 0
      %1866 = vmatprep.mubr.bf16.mxu0 0
      %1867 = vmatmul.mubr.bf16.gmra.mrb[0].mxu0 %v1829
      %v1868 = vpop.f32.mrb[0].mxu0
      %v1869 = vadd.f32 0.0, %v1868
      %v1870 = vpop.f32.mrb[0].mxu0
      %v1871 = vpop.f32.mrb[0].mxu0
      %v1872 = vadd.f32 0.0, %v1871
      %v1873 = vpop.f32.mrb[0].mxu0
      %1874 = vdwg.mxu0
      %1875 = vrot.lane.b32.xlu0 %v359, 104
      %v1876 = vpop.permute.xlu0 %1875
      %1877 = vrot.lane.b32.xlu0 %v359, 72
      %v1878 = vpop.permute.xlu0 %1877
      %v1880 = vsel %vm365, %v1876, 0
      %v1883 = vsel %vm365, %v1878, 0
      %1885 = vmatprep.subr.bf16.mxu0 0
      %1886 = vmatpush1.bf16.xpose.msra.mxu0 %v1883
      %1887 = vmatprep.subr.bf16.mxu0 0
      %1888 = vmatpush1.bf16.xpose.msra.mxu0 0
      %1889 = vmatprep.subr.bf16.mxu0 0
      %1890 = vmatpush1.bf16.xpose.msra.mxu0 0
      %1891 = vmatprep.subr.bf16.mxu0 0
      %1892 = vmatpush1.bf16.xpose.msra.mxu0 0
      %1893 = vmatprep.subr.bf16.mxu0 0
      %1894 = vmatpush1.bf16.xpose.msra.mxu0 0
      %1895 = vmatprep.subr.bf16.mxu0 0
      %1896 = vmatpush1.bf16.xpose.msra.mxu0 0
      %1897 = vmatprep.subr.bf16.mxu0 0
      %1898 = vmatpush1.bf16.xpose.msra.mxu0 0
      %1899 = vmatprep.subr.bf16.mxu0 0
      %1900 = vmatpush1.bf16.xpose.msra.mxu0 0
      %1901 = vmatprep.subr.bf16.mxu0 0
      %1902 = vmatpush1.bf16.xpose.msra.mxu0 0
      %1903 = vmatprep.subr.bf16.mxu0 0
      %1904 = vmatpush1.bf16.xpose.msra.mxu0 0
      %1905 = vmatprep.subr.bf16.mxu0 0
      %1906 = vmatpush1.bf16.xpose.msra.mxu0 0
      %1907 = vmatprep.subr.bf16.mxu0 0
      %1908 = vmatpush1.bf16.xpose.msra.mxu0 0
      %1909 = vmatprep.subr.bf16.mxu0 0
      %1910 = vmatpush1.bf16.xpose.msra.mxu0 0
      %1911 = vmatprep.subr.bf16.mxu0 0
      %1912 = vmatpush1.bf16.xpose.msra.mxu0 0
      %1913 = vmatprep.subr.bf16.mxu0 0
      %1914 = vmatpush1.bf16.xpose.msra.mxu0 0
      %1915 = vmatprep.subr.bf16.mxu0 0
      %1916 = vmatpush1.bf16.xpose.msra.mxu0 0
      %1917 = vmatprep.mubr.bf16.mxu0 0
      %1918 = vmatmul.mubr.bf16.gmra.mrb[0].mxu0 %v1880
      %v1919 = vpop.f32.mrb[0].mxu0
      %v1920 = vadd.f32 0.0, %v1919
      %v1921 = vpop.f32.mrb[0].mxu0
      %v1922 = vpop.f32.mrb[0].mxu0
      %v1923 = vadd.f32 0.0, %v1922
      %v1924 = vpop.f32.mrb[0].mxu0
      %1925 = vdwg.mxu0
      %1926 = vrot.lane.b32.xlu0 %v360, 104
      %v1927 = vpop.permute.xlu0 %1926
      %1928 = vrot.lane.b32.xlu0 %v360, 72
      %v1929 = vpop.permute.xlu0 %1928
      %v1931 = vsel %vm365, %v1927, 0
      %v1934 = vsel %vm365, %v1929, 0
      %1936 = vmatprep.subr.bf16.mxu0 0
      %1937 = vmatpush1.bf16.xpose.msra.mxu0 %v1934
      %1938 = vmatprep.subr.bf16.mxu0 0
      %1939 = vmatpush1.bf16.xpose.msra.mxu0 0
      %1940 = vmatprep.subr.bf16.mxu0 0
      %1941 = vmatpush1.bf16.xpose.msra.mxu0 0
      %1942 = vmatprep.subr.bf16.mxu0 0
      %1943 = vmatpush1.bf16.xpose.msra.mxu0 0
      %1944 = vmatprep.subr.bf16.mxu0 0
      %1945 = vmatpush1.bf16.xpose.msra.mxu0 0
      %1946 = vmatprep.subr.bf16.mxu0 0
      %1947 = vmatpush1.bf16.xpose.msra.mxu0 0
      %1948 = vmatprep.subr.bf16.mxu0 0
      %1949 = vmatpush1.bf16.xpose.msra.mxu0 0
      %1950 = vmatprep.subr.bf16.mxu0 0
      %1951 = vmatpush1.bf16.xpose.msra.mxu0 0
      %1952 = vmatprep.subr.bf16.mxu0 0
      %1953 = vmatpush1.bf16.xpose.msra.mxu0 0
      %1954 = vmatprep.subr.bf16.mxu0 0
      %1955 = vmatpush1.bf16.xpose.msra.mxu0 0
      %1956 = vmatprep.subr.bf16.mxu0 0
      %1957 = vmatpush1.bf16.xpose.msra.mxu0 0
      %1958 = vmatprep.subr.bf16.mxu0 0
      %1959 = vmatpush1.bf16.xpose.msra.mxu0 0
      %1960 = vmatprep.subr.bf16.mxu0 0
      %1961 = vmatpush1.bf16.xpose.msra.mxu0 0
      %1962 = vmatprep.subr.bf16.mxu0 0
      %1963 = vmatpush1.bf16.xpose.msra.mxu0 0
      %1964 = vmatprep.subr.bf16.mxu0 0
      %1965 = vmatpush1.bf16.xpose.msra.mxu0 0
      %1966 = vmatprep.subr.bf16.mxu0 0
      %1967 = vmatpush1.bf16.xpose.msra.mxu0 0
      %1968 = vmatprep.mubr.bf16.mxu0 0
      %1969 = vmatmul.mubr.bf16.gmra.mrb[0].mxu0 %v1931
      %v1970 = vpop.f32.mrb[0].mxu0
      %v1971 = vadd.f32 0.0, %v1970
      %v1972 = vpop.f32.mrb[0].mxu0
      %v1973 = vpop.f32.mrb[0].mxu0
      %v1974 = vadd.f32 0.0, %v1973
      %v1975 = vpop.f32.mrb[0].mxu0
      %1976 = vdwg.mxu0
      %1977 = vrot.lane.b32.xlu0 %v361, 104
      %v1978 = vpop.permute.xlu0 %1977
      %1979 = vrot.lane.b32.xlu0 %v361, 72
      %v1980 = vpop.permute.xlu0 %1979
      %v1982 = vsel %vm365, %v1978, 0
      %v1985 = vsel %vm365, %v1980, 0
      %1987 = vmatprep.subr.bf16.mxu0 0
      %1988 = vmatpush1.bf16.xpose.msra.mxu0 %v1985
      %1989 = vmatprep.subr.bf16.mxu0 0
      %1990 = vmatpush1.bf16.xpose.msra.mxu0 0
      %1991 = vmatprep.subr.bf16.mxu0 0
      %1992 = vmatpush1.bf16.xpose.msra.mxu0 0
      %1993 = vmatprep.subr.bf16.mxu0 0
      %1994 = vmatpush1.bf16.xpose.msra.mxu0 0
      %1995 = vmatprep.subr.bf16.mxu0 0
      %1996 = vmatpush1.bf16.xpose.msra.mxu0 0
      %1997 = vmatprep.subr.bf16.mxu0 0
      %1998 = vmatpush1.bf16.xpose.msra.mxu0 0
      %1999 = vmatprep.subr.bf16.mxu0 0
      %2000 = vmatpush1.bf16.xpose.msra.mxu0 0
      %2001 = vmatprep.subr.bf16.mxu0 0
      %2002 = vmatpush1.bf16.xpose.msra.mxu0 0
      %2003 = vmatprep.subr.bf16.mxu0 0
      %2004 = vmatpush1.bf16.xpose.msra.mxu0 0
      %2005 = vmatprep.subr.bf16.mxu0 0
      %2006 = vmatpush1.bf16.xpose.msra.mxu0 0
      %2007 = vmatprep.subr.bf16.mxu0 0
      %2008 = vmatpush1.bf16.xpose.msra.mxu0 0
      %2009 = vmatprep.subr.bf16.mxu0 0
      %2010 = vmatpush1.bf16.xpose.msra.mxu0 0
      %2011 = vmatprep.subr.bf16.mxu0 0
      %2012 = vmatpush1.bf16.xpose.msra.mxu0 0
      %2013 = vmatprep.subr.bf16.mxu0 0
      %2014 = vmatpush1.bf16.xpose.msra.mxu0 0
      %2015 = vmatprep.subr.bf16.mxu0 0
      %2016 = vmatpush1.bf16.xpose.msra.mxu0 0
      %2017 = vmatprep.subr.bf16.mxu0 0
      %2018 = vmatpush1.bf16.xpose.msra.mxu0 0
      %2019 = vmatprep.mubr.bf16.mxu0 0
      %2020 = vmatmul.mubr.bf16.gmra.mrb[0].mxu0 %v1982
      %v2021 = vpop.f32.mrb[0].mxu0
      %v2022 = vadd.f32 0.0, %v2021
      %v2023 = vpop.f32.mrb[0].mxu0
      %v2024 = vpop.f32.mrb[0].mxu0
      %v2025 = vadd.f32 0.0, %v2024
      %v2026 = vpop.f32.mrb[0].mxu0
      %2027 = vdwg.mxu0
      %v2028 = vsel %vm563, %v1869, -inf
      %2029 = vmax.xlane.f32.xlu0 %v2028
      %v2030 = vpop.xlane.xlu0 %2029
      %v2031 = vsel %vm563, %v1872, -inf
      %2032 = vmax.xlane.f32.xlu0 %v2031
      %v2033 = vpop.xlane.xlu0 %2032
      %v2034 = vsel %vm563, %v1920, -inf
      %2035 = vmax.xlane.f32.xlu0 %v2034
      %v2036 = vpop.xlane.xlu0 %2035
      %v2037 = vsel %vm563, %v1923, -inf
      %2038 = vmax.xlane.f32.xlu0 %v2037
      %v2039 = vpop.xlane.xlu0 %2038
      %v2040 = vsel %vm563, %v1971, -inf
      %2041 = vmax.xlane.f32.xlu0 %v2040
      %v2042 = vpop.xlane.xlu0 %2041
      %v2043 = vsel %vm563, %v1974, -inf
      %2044 = vmax.xlane.f32.xlu0 %v2043
      %v2045 = vpop.xlane.xlu0 %2044
      %v2046 = vsel %vm563, %v2022, -inf
      %2047 = vmax.xlane.f32.xlu0 %v2046
      %v2048 = vpop.xlane.xlu0 %2047
      %v2049 = vsel %vm563, %v2025, -inf
      %2050 = vmax.xlane.f32.xlu0 %v2049
      %v2051 = vpop.xlane.xlu0 %2050
      %v2052 = vsub.f32 %v1869, %v2030
      %v2053 = vsub.f32 %v1872, %v2033
      %v2054 = vsub.f32 %v1920, %v2036
      %v2055 = vsub.f32 %v1923, %v2039
      %v2056 = vsub.f32 %v1971, %v2042
      %v2057 = vsub.f32 %v1974, %v2045
      %v2058 = vsub.f32 %v2022, %v2048
      %v2059 = vsub.f32 %v2025, %v2051
      %v2060 = vmul.f32 %v2052, 1.442695
      %v2061 = vpow.pop %v2060
      %v2062 = vmul.f32 %v2053, 1.442695
      %v2063 = vpow.pop %v2062
      %v2064 = vmul.f32 %v2054, 1.442695
      %v2065 = vpow.pop %v2064
      %v2066 = vmul.f32 %v2055, 1.442695
      %v2067 = vpow.pop %v2066
      %v2068 = vmul.f32 %v2056, 1.442695
      %v2069 = vpow.pop %v2068
      %v2070 = vmul.f32 %v2057, 1.442695
      %v2071 = vpow.pop %v2070
      %v2072 = vmul.f32 %v2058, 1.442695
      %v2073 = vpow.pop %v2072
      %v2074 = vmul.f32 %v2059, 1.442695
      %v2075 = vpow.pop %v2074
      %v2076 = vsel %vm563, %v2061, 0.0
      %2077 = vadd.xlane.f32.xlu0 %v2076
      %v2078 = vpop.xlane.xlu0 %2077
      %v2079 = vsel %vm563, %v2063, 0.0
      %2080 = vadd.xlane.f32.xlu0 %v2079
      %v2081 = vpop.xlane.xlu0 %2080
      %v2082 = vsel %vm563, %v2065, 0.0
      %2083 = vadd.xlane.f32.xlu0 %v2082
      %v2084 = vpop.xlane.xlu0 %2083
      %v2085 = vsel %vm563, %v2067, 0.0
      %2086 = vadd.xlane.f32.xlu0 %v2085
      %v2087 = vpop.xlane.xlu0 %2086
      %v2088 = vsel %vm563, %v2069, 0.0
      %2089 = vadd.xlane.f32.xlu0 %v2088
      %v2090 = vpop.xlane.xlu0 %2089
      %v2091 = vsel %vm563, %v2071, 0.0
      %2092 = vadd.xlane.f32.xlu0 %v2091
      %v2093 = vpop.xlane.xlu0 %2092
      %v2094 = vsel %vm563, %v2073, 0.0
      %2095 = vadd.xlane.f32.xlu0 %v2094
      %v2096 = vpop.xlane.xlu0 %2095
      %v2097 = vsel %vm563, %v2075, 0.0
      %2098 = vadd.xlane.f32.xlu0 %v2097
      %v2099 = vpop.xlane.xlu0 %2098
      %v2100 = vpack.c.bf16 %v2063, %v2061
      %v2101 = vpack.c.bf16 %v2067, %v2065
      %v2102 = vpack.c.bf16 %v2071, %v2069
      %v2103 = vpack.c.bf16 %v2075, %v2073
      %2104 = vrot.lane.b32.xlu0 %v358, 40
      %v2105 = vpop.permute.xlu0 %2104
      %v2108 = vsel %vm563, %v2100, 0
      %2110 = vmatprep.subr.bf16.mxu0 0
      %2111 = vmatpush1.bf16.msra.mxu0 %v2105
      %2112 = vmatprep.subr.bf16.mxu0 0
      %2113 = vmatpush1.bf16.msra.mxu0 0
      %2114 = vmatprep.subr.bf16.mxu0 0
      %2115 = vmatpush1.bf16.msra.mxu0 0
      %2116 = vmatprep.subr.bf16.mxu0 0
      %2117 = vmatpush1.bf16.msra.mxu0 0
      %2118 = vmatprep.subr.bf16.mxu0 0
      %2119 = vmatpush1.bf16.msra.mxu0 0
      %2120 = vmatprep.subr.bf16.mxu0 0
      %2121 = vmatpush1.bf16.msra.mxu0 0
      %2122 = vmatprep.subr.bf16.mxu0 0
      %2123 = vmatpush1.bf16.msra.mxu0 0
      %2124 = vmatprep.subr.bf16.mxu0 0
      %2125 = vmatpush1.bf16.msra.mxu0 0
      %2126 = vmatprep.subr.bf16.mxu0 0
      %2127 = vmatpush1.bf16.msra.mxu0 0
      %2128 = vmatprep.subr.bf16.mxu0 0
      %2129 = vmatpush1.bf16.msra.mxu0 0
      %2130 = vmatprep.subr.bf16.mxu0 0
      %2131 = vmatpush1.bf16.msra.mxu0 0
      %2132 = vmatprep.subr.bf16.mxu0 0
      %2133 = vmatpush1.bf16.msra.mxu0 0
      %2134 = vmatprep.subr.bf16.mxu0 0
      %2135 = vmatpush1.bf16.msra.mxu0 0
      %2136 = vmatprep.subr.bf16.mxu0 0
      %2137 = vmatpush1.bf16.msra.mxu0 0
      %2138 = vmatprep.subr.bf16.mxu0 0
      %2139 = vmatpush1.bf16.msra.mxu0 0
      %2140 = vmatprep.subr.bf16.mxu0 0
      %2141 = vmatpush1.bf16.msra.mxu0 0
      %2142 = vmatprep.mubr.bf16.mxu0 0
      %2143 = vmatmul.mubr.bf16.gmra.mrb[0].mxu0 %v2108
      %v2144 = vpop.f32.mrb[0].mxu0
      %v2145 = vadd.f32 0.0, %v2144
      %v2146 = vpop.f32.mrb[0].mxu0
      %v2147 = vpop.f32.mrb[0].mxu0
      %v2148 = vadd.f32 0.0, %v2147
      %v2149 = vpop.f32.mrb[0].mxu0
      %2150 = vdwg.mxu0
      %2151 = vrot.lane.b32.xlu0 %v359, 40
      %v2152 = vpop.permute.xlu0 %2151
      %v2155 = vsel %vm563, %v2101, 0
      %2157 = vmatprep.subr.bf16.mxu0 0
      %2158 = vmatpush1.bf16.msra.mxu0 %v2152
      %2159 = vmatprep.subr.bf16.mxu0 0
      %2160 = vmatpush1.bf16.msra.mxu0 0
      %2161 = vmatprep.subr.bf16.mxu0 0
      %2162 = vmatpush1.bf16.msra.mxu0 0
      %2163 = vmatprep.subr.bf16.mxu0 0
      %2164 = vmatpush1.bf16.msra.mxu0 0
      %2165 = vmatprep.subr.bf16.mxu0 0
      %2166 = vmatpush1.bf16.msra.mxu0 0
      %2167 = vmatprep.subr.bf16.mxu0 0
      %2168 = vmatpush1.bf16.msra.mxu0 0
      %2169 = vmatprep.subr.bf16.mxu0 0
      %2170 = vmatpush1.bf16.msra.mxu0 0
      %2171 = vmatprep.subr.bf16.mxu0 0
      %2172 = vmatpush1.bf16.msra.mxu0 0
      %2173 = vmatprep.subr.bf16.mxu0 0
      %2174 = vmatpush1.bf16.msra.mxu0 0
      %2175 = vmatprep.subr.bf16.mxu0 0
      %2176 = vmatpush1.bf16.msra.mxu0 0
      %2177 = vmatprep.subr.bf16.mxu0 0
      %2178 = vmatpush1.bf16.msra.mxu0 0
      %2179 = vmatprep.subr.bf16.mxu0 0
      %2180 = vmatpush1.bf16.msra.mxu0 0
      %2181 = vmatprep.subr.bf16.mxu0 0
      %2182 = vmatpush1.bf16.msra.mxu0 0
      %2183 = vmatprep.subr.bf16.mxu0 0
      %2184 = vmatpush1.bf16.msra.mxu0 0
      %2185 = vmatprep.subr.bf16.mxu0 0
      %2186 = vmatpush1.bf16.msra.mxu0 0
      %2187 = vmatprep.subr.bf16.mxu0 0
      %2188 = vmatpush1.bf16.msra.mxu0 0
      %2189 = vmatprep.mubr.bf16.mxu0 0
      %2190 = vmatmul.mubr.bf16.gmra.mrb[0].mxu0 %v2155
      %v2191 = vpop.f32.mrb[0].mxu0
      %v2192 = vadd.f32 0.0, %v2191
      %v2193 = vpop.f32.mrb[0].mxu0
      %v2194 = vpop.f32.mrb[0].mxu0
      %v2195 = vadd.f32 0.0, %v2194
      %v2196 = vpop.f32.mrb[0].mxu0
      %2197 = vdwg.mxu0
      %2198 = vrot.lane.b32.xlu0 %v360, 40
      %v2199 = vpop.permute.xlu0 %2198
      %v2202 = vsel %vm563, %v2102, 0
      %2204 = vmatprep.subr.bf16.mxu0 0
      %2205 = vmatpush1.bf16.msra.mxu0 %v2199
      %2206 = vmatprep.subr.bf16.mxu0 0
      %2207 = vmatpush1.bf16.msra.mxu0 0
      %2208 = vmatprep.subr.bf16.mxu0 0
      %2209 = vmatpush1.bf16.msra.mxu0 0
      %2210 = vmatprep.subr.bf16.mxu0 0
      %2211 = vmatpush1.bf16.msra.mxu0 0
      %2212 = vmatprep.subr.bf16.mxu0 0
      %2213 = vmatpush1.bf16.msra.mxu0 0
      %2214 = vmatprep.subr.bf16.mxu0 0
      %2215 = vmatpush1.bf16.msra.mxu0 0
      %2216 = vmatprep.subr.bf16.mxu0 0
      %2217 = vmatpush1.bf16.msra.mxu0 0
      %2218 = vmatprep.subr.bf16.mxu0 0
      %2219 = vmatpush1.bf16.msra.mxu0 0
      %2220 = vmatprep.subr.bf16.mxu0 0
      %2221 = vmatpush1.bf16.msra.mxu0 0
      %2222 = vmatprep.subr.bf16.mxu0 0
      %2223 = vmatpush1.bf16.msra.mxu0 0
      %2224 = vmatprep.subr.bf16.mxu0 0
      %2225 = vmatpush1.bf16.msra.mxu0 0
      %2226 = vmatprep.subr.bf16.mxu0 0
      %2227 = vmatpush1.bf16.msra.mxu0 0
      %2228 = vmatprep.subr.bf16.mxu0 0
      %2229 = vmatpush1.bf16.msra.mxu0 0
      %2230 = vmatprep.subr.bf16.mxu0 0
      %2231 = vmatpush1.bf16.msra.mxu0 0
      %2232 = vmatprep.subr.bf16.mxu0 0
      %2233 = vmatpush1.bf16.msra.mxu0 0
      %2234 = vmatprep.subr.bf16.mxu0 0
      %2235 = vmatpush1.bf16.msra.mxu0 0
      %2236 = vmatprep.mubr.bf16.mxu0 0
      %2237 = vmatmul.mubr.bf16.gmra.mrb[0].mxu0 %v2202
      %v2238 = vpop.f32.mrb[0].mxu0
      %v2239 = vadd.f32 0.0, %v2238
      %v2240 = vpop.f32.mrb[0].mxu0
      %v2241 = vpop.f32.mrb[0].mxu0
      %v2242 = vadd.f32 0.0, %v2241
      %v2243 = vpop.f32.mrb[0].mxu0
      %2244 = vdwg.mxu0
      %2245 = vrot.lane.b32.xlu0 %v361, 40
      %v2246 = vpop.permute.xlu0 %2245
      %v2249 = vsel %vm563, %v2103, 0
      %2251 = vmatprep.subr.bf16.mxu0 0
      %2252 = vmatpush1.bf16.msra.mxu0 %v2246
      %2253 = vmatprep.subr.bf16.mxu0 0
      %2254 = vmatpush1.bf16.msra.mxu0 0
      %2255 = vmatprep.subr.bf16.mxu0 0
      %2256 = vmatpush1.bf16.msra.mxu0 0
      %2257 = vmatprep.subr.bf16.mxu0 0
      %2258 = vmatpush1.bf16.msra.mxu0 0
      %2259 = vmatprep.subr.bf16.mxu0 0
      %2260 = vmatpush1.bf16.msra.mxu0 0
      %2261 = vmatprep.subr.bf16.mxu0 0
      %2262 = vmatpush1.bf16.msra.mxu0 0
      %2263 = vmatprep.subr.bf16.mxu0 0
      %2264 = vmatpush1.bf16.msra.mxu0 0
      %2265 = vmatprep.subr.bf16.mxu0 0
      %2266 = vmatpush1.bf16.msra.mxu0 0
      %2267 = vmatprep.subr.bf16.mxu0 0
      %2268 = vmatpush1.bf16.msra.mxu0 0
      %2269 = vmatprep.subr.bf16.mxu0 0
      %2270 = vmatpush1.bf16.msra.mxu0 0
      %2271 = vmatprep.subr.bf16.mxu0 0
      %2272 = vmatpush1.bf16.msra.mxu0 0
      %2273 = vmatprep.subr.bf16.mxu0 0
      %2274 = vmatpush1.bf16.msra.mxu0 0
      %2275 = vmatprep.subr.bf16.mxu0 0
      %2276 = vmatpush1.bf16.msra.mxu0 0
      %2277 = vmatprep.subr.bf16.mxu0 0
      %2278 = vmatpush1.bf16.msra.mxu0 0
      %2279 = vmatprep.subr.bf16.mxu0 0
      %2280 = vmatpush1.bf16.msra.mxu0 0
      %2281 = vmatprep.subr.bf16.mxu0 0
      %2282 = vmatpush1.bf16.msra.mxu0 0
      %2283 = vmatprep.mubr.bf16.mxu0 0
      %2284 = vmatmul.mubr.bf16.gmra.mrb[0].mxu0 %v2249
      %v2285 = vpop.f32.mrb[0].mxu0
      %v2286 = vadd.f32 0.0, %v2285
      %v2287 = vpop.f32.mrb[0].mxu0
      %v2288 = vpop.f32.mrb[0].mxu0
      %v2289 = vadd.f32 0.0, %v2288
      %v2290 = vpop.f32.mrb[0].mxu0
      %2291 = vdwg.mxu0
      %v2292 = vrcp.pop %v2078
      %v2293 = vrcp.pop %v2081
      %v2294 = vrcp.pop %v2084
      %v2295 = vrcp.pop %v2087
      %v2296 = vrcp.pop %v2090
      %v2297 = vrcp.pop %v2093
      %v2298 = vrcp.pop %v2096
      %v2299 = vrcp.pop %v2099
      %v2300 = vmul.f32 %v2145, %v2292
      %v2301 = vmul.f32 %v2148, %v2293
      %v2302 = vmul.f32 %v2192, %v2294
      %v2303 = vmul.f32 %v2195, %v2295
      %v2304 = vmul.f32 %v2239, %v2296
      %v2305 = vmul.f32 %v2242, %v2297
      %v2306 = vmul.f32 %v2286, %v2298
      %v2307 = vmul.f32 %v2289, %v2299
      %v2308 = vpack.c.bf16 %v2301, %v2300
      %v2309 = vpack.c.bf16 %v2303, %v2302
      %v2310 = vpack.c.bf16 %v2305, %v2304
      %v2311 = vpack.c.bf16 %v2307, %v2306
      %2316 = vrot.lane.b32.xlu0 %v1332, 8
      %v2317 = vpop.permute.xlu0 %2316
      %2318 = vrot.lane.b32.xlu0 %v1333, 8
      %v2319 = vpop.permute.xlu0 %2318
      %2320 = vrot.lane.b32.xlu0 %v1334, 8
      %v2321 = vpop.permute.xlu0 %2320
      %2322 = vrot.lane.b32.xlu0 %v1335, 8
      %v2323 = vpop.permute.xlu0 %2322
      %2328 = vrot.lane.b32.xlu0 %v1820, 16
      %v2329 = vpop.permute.xlu0 %2328
      %2330 = vrot.lane.b32.xlu0 %v1821, 16
      %v2331 = vpop.permute.xlu0 %2330
      %2332 = vrot.lane.b32.xlu0 %v1822, 16
      %v2333 = vpop.permute.xlu0 %2332
      %2334 = vrot.lane.b32.xlu0 %v1823, 16
      %v2335 = vpop.permute.xlu0 %2334
      %2340 = vrot.lane.b32.xlu0 %v2308, 24
      %v2341 = vpop.permute.xlu0 %2340
      %2342 = vrot.lane.b32.xlu0 %v2309, 24
      %v2343 = vpop.permute.xlu0 %2342
      %2344 = vrot.lane.b32.xlu0 %v2310, 24
      %v2345 = vpop.permute.xlu0 %2344
      %2346 = vrot.lane.b32.xlu0 %v2311, 24
      %v2347 = vpop.permute.xlu0 %2346
      %v2350 = vsel %vm365, %v844, %v2317
      %v2353 = vsel %vm365, %v845, %v2319
      %v2356 = vsel %vm365, %v846, %v2321
      %v2359 = vsel %vm365, %v847, %v2323
      %v2361 = vsel %vm563, %v2350, %v2329
      %v2363 = vsel %vm563, %v2353, %v2331
      %v2365 = vsel %vm563, %v2356, %v2333
      %v2367 = vsel %vm563, %v2359, %v2335
      %vm2368 = vcmask 195584
      %v2370 = vsel %vm2368, %v2361, %v2341
      %v2372 = vsel %vm2368, %v2363, %v2343
      %v2374 = vsel %vm2368, %v2365, %v2345
      %v2376 = vsel %vm2368, %v2367, %v2347
      %v2377 = vld [vmem:[%s3] sm:$0xf]
      %v2378 = vld [vmem:[%s3 + $0x4] sm:$0xf]
      %v2379 = vld [vmem:[%s3 + $0x8] sm:$0xf]
      %v2380 = vld [vmem:[%s3 + $0xc] sm:$0xf]
      %v2381 = vld [vmem:[%s4] sm:$0x1]
      %v2383 = vlaneseq
      %v2384 = vshrl.u32 %v2383, 7
      %v2385 = vsub.s32 0, %v2384
      %v2386 = vrot.slane %v2381, %v2385
      %v2392 = vunpack.c.l.b16 %v2377
      %v2393 = vunpack.c.l.b16 %v2378
      %v2394 = vunpack.c.l.b16 %v2379
      %v2395 = vunpack.c.l.b16 %v2380
      %v2396 = vpack.c.b16 %v2393, %v2392
      %v2397 = vpack.c.b16 %v2395, %v2394
      %v2400 = vsel %vm280, %v2370, 0
      %v2402 = vsel %vm280, %v2372, 0
      %v2404 = vsel %vm280, %v2374, 0
      %v2406 = vsel %vm280, %v2376, 0
      %2408 = vmatprep.subr.bf16.mxu0 0
      %2409 = vmatpush1.bf16.msra.mxu0 %v2396
      %2410 = vmatprep.subr.bf16.mxu0 0
      %2411 = vmatpush1.bf16.msra.mxu0 %v2397
      %2412 = vmatprep.subr.bf16.mxu0 0
      %2413 = vmatpush1.bf16.msra.mxu0 0
      %2414 = vmatprep.subr.bf16.mxu0 0
      %2415 = vmatpush1.bf16.msra.mxu0 0
      %2416 = vmatprep.subr.bf16.mxu0 0
      %2417 = vmatpush1.bf16.msra.mxu0 0
      %2418 = vmatprep.subr.bf16.mxu0 0
      %2419 = vmatpush1.bf16.msra.mxu0 0
      %2420 = vmatprep.subr.bf16.mxu0 0
      %2421 = vmatpush1.bf16.msra.mxu0 0
      %2422 = vmatprep.subr.bf16.mxu0 0
      %2423 = vmatpush1.bf16.msra.mxu0 0
      %2424 = vmatprep.subr.bf16.mxu0 0
      %2425 = vmatpush1.bf16.msra.mxu0 0
      %2426 = vmatprep.subr.bf16.mxu0 0
      %2427 = vmatpush1.bf16.msra.mxu0 0
      %2428 = vmatprep.subr.bf16.mxu0 0
      %2429 = vmatpush1.bf16.msra.mxu0 0
      %2430 = vmatprep.subr.bf16.mxu0 0
      %2431 = vmatpush1.bf16.msra.mxu0 0
      %2432 = vmatprep.subr.bf16.mxu0 0
      %2433 = vmatpush1.bf16.msra.mxu0 0
      %2434 = vmatprep.subr.bf16.mxu0 0
      %2435 = vmatpush1.bf16.msra.mxu0 0
      %2436 = vmatprep.subr.bf16.mxu0 0
      %2437 = vmatpush1.bf16.msra.mxu0 0
      %2438 = vmatprep.subr.bf16.mxu0 0
      %2439 = vmatpush1.bf16.msra.mxu0 0
      %2440 = vmatprep.mubr.bf16.mxu0 0
      %2441 = vmatmul.mubr.bf16.gmra.mrb[0].mxu0 %v2400
      %v2442 = vpop.f32.mrb[0].mxu0
      %v2443 = vadd.f32 %v2386, %v2442
      %v2444 = vpop.f32.mrb[0].mxu0
      %v2445 = vpop.f32.mrb[0].mxu0
      %v2446 = vadd.f32 %v2386, %v2445
      %v2447 = vpop.f32.mrb[0].mxu0
      %2448 = vmatprep.mubr.bf16.mxu0 0
      %2449 = vmatmul.mubr.bf16.gmra.mrb[0].mxu0 %v2402
      %v2450 = vpop.f32.mrb[0].mxu0
      %v2451 = vadd.f32 %v2386, %v2450
      %v2452 = vpop.f32.mrb[0].mxu0
      %v2453 = vpop.f32.mrb[0].mxu0
      %v2454 = vadd.f32 %v2386, %v2453
      %v2455 = vpop.f32.mrb[0].mxu0
      %2456 = vmatprep.mubr.bf16.mxu0 0
      %2457 = vmatmul.mubr.bf16.gmra.mrb[0].mxu0 %v2404
      %v2458 = vpop.f32.mrb[0].mxu0
      %v2459 = vadd.f32 %v2386, %v2458
      %v2460 = vpop.f32.mrb[0].mxu0
      %v2461 = vpop.f32.mrb[0].mxu0
      %v2462 = vadd.f32 %v2386, %v2461
      %v2463 = vpop.f32.mrb[0].mxu0
      %2464 = vmatprep.mubr.bf16.mxu0 0
      %2465 = vmatmul.mubr.bf16.gmra.mrb[0].mxu0 %v2406
      %v2466 = vpop.f32.mrb[0].mxu0
      %v2467 = vadd.f32 %v2386, %v2466
      %v2468 = vpop.f32.mrb[0].mxu0
      %v2469 = vpop.f32.mrb[0].mxu0
      %v2470 = vadd.f32 %v2386, %v2469
      %v2471 = vpop.f32.mrb[0].mxu0
      %2472 = vdwg.mxu0
      %v2473 = vpack.c.bf16 %v2446, %v2443
      %v2474 = vpack.c.bf16 %v2454, %v2451
      %v2475 = vpack.c.bf16 %v2462, %v2459
      %v2476 = vpack.c.bf16 %v2470, %v2467
      %v2481 = vunpack.c.l.b16 %v2473
      %v2482 = vunpack.c.h.b16 %v2473
      %v2483 = vunpack.c.l.b16 %v2474
      %v2484 = vunpack.c.h.b16 %v2474
      %v2485 = vunpack.c.l.b16 %v2475
      %v2486 = vunpack.c.h.b16 %v2475
      %v2487 = vunpack.c.l.b16 %v2476
      %v2488 = vunpack.c.h.b16 %v2476
      %v2489 = vpack.c.b16 %v2481, %v2481
      %v2490 = vpack.c.b16 %v2482, %v2482
      %v2491 = vpack.c.b16 %v2483, %v2483
      %v2492 = vpack.c.b16 %v2484, %v2484
      %v2493 = vpack.c.b16 %v2485, %v2485
      %v2494 = vpack.c.b16 %v2486, %v2486
      %v2495 = vpack.c.b16 %v2487, %v2487
      %v2496 = vpack.c.b16 %v2488, %v2488
      %vm2505 = vcmask 257024
      %2506 = vst.msk [vmem:[%s226] sm:$0xf] %vm2505, %v2489
      %2507 = vst.msk [vmem:[%s226 + $0x4] sm:$0xf] %vm2505, %v2490
      %2508 = vst.msk [vmem:[%s226 + $0x8] sm:$0xf] %vm2505, %v2491
      %2509 = vst.msk [vmem:[%s226 + $0xc] sm:$0xf] %vm2505, %v2492
      %2510 = vst.msk [vmem:[%s226 + $0x10] sm:$0xf] %vm2505, %v2493
      %2511 = vst.msk [vmem:[%s226 + $0x14] sm:$0xf] %vm2505, %v2494
      %2512 = vst.msk [vmem:[%s226 + $0x18] sm:$0xf] %vm2505, %v2495
      %2513 = vst.msk [vmem:[%s226 + $0x1c] sm:$0xf] %vm2505, %v2496
      %s2514 = smul.u32 8, %s16
      %p2515 = scmp.lt.s32.totalorder %s2514, 15
      %s2516 = scalar_select %p2515, %s2514, 15
      %s2517 = smul.addr %s2516, 4
      %s2518 = scalar_lea.vmem %s5, %s2517
      // Predicated region
      $region41: #{tpu_custom_call.1} parent=39 // pred_check
        %p2519 = pneg %p144
      $region42: #{tpu_custom_call.1} parent=39 // pred_check_branch
        %2521 = sbr.rel (%p2519) target = $region44
      $region43: #{tpu_custom_call.1} parent=39 // pred_region
        %s2522 = smul.u32 8, %s16
      $region44: #{tpu_custom_call.1} parent=39 // pred_fallthru
        _
    $region40: #{tpu_custom_call.1} parent=5 // pred_fallthru
      _
    %p2523 = scmp.le.s32.totalorder 2, %s11
    // Predicated region
    $region45: #{tpu_custom_call.1} parent=5 // pred_check
      %p2524 = pneg %p2523
    $region46: #{tpu_custom_call.1} parent=5 // pred_check_branch
      %2526 = sbr.rel (%p2524) target = $region48
    $region47: #{tpu_custom_call.1} parent=5 // pred_region
      %s2527 = ssub.s32 %s11, 2
      // Predicated region
      $region49: #{tpu_custom_call.1} parent=47 // pred_check
        %p2528 = pneg %p150
      $region50: #{tpu_custom_call.1} parent=47 // pred_check_branch
        %2530 = sbr.rel (%p2528) target = $region52
      $region51: #{tpu_custom_call.1} parent=47 // pred_region
        %s2531 = smul.u32 8, %s17
        %p2532 = scmp.lt.s32.totalorder %s2531, 15
        %s2533 = scalar_select %p2532, %s2531, 15
        %s2534 = smul.addr %s2533, 4
        %s2535 = scalar_lea.vmem %s5, %s2534
      $region52: #{tpu_custom_call.1} parent=47 // pred_fallthru
        _
    $region48: #{tpu_custom_call.1} parent=5 // pred_fallthru
      _
  $region6: #{tpu_custom_call.1} parent=0 // loop_footer
    %s15 = sadd.s32 1, %s11
  $region7: #{tpu_custom_call.1} parent=0 // loop_footer_branch
    %10 = sbr.rel target = $region3
  $region8: #{tpu_custom_call.1} parent=0 // loop_exit
    _

</llo_original>
